<compile_context>
chip_gen: v5e
topology: v5e:2x2
jax: 0.10.0
libtpu: 0.0.40
codegen_flags: <defaults>
</compile_context>

<pallas_src>
import functools
import math

import jax
import jax.numpy as jnp
from jax.experimental import pallas as pl
from jax.experimental.pallas import tpu as pltpu

# ----------------------------- config (small, synthetic) -----------------------------
VOCAB = 40          # n_src_vocab
D_MODEL = 32        # transformer.encoder_hidden
N_HEADS = 2
D_K = 16
ENC_LAYERS = 2
FFT_FILTER = 64     # conv_filter_size in FFT block
FFT_KERNEL = 3
VP_FILTER = 64      # variance predictor filter size
VP_KERNEL = 3
N_BINS = 16         # pitch / energy quantization bins
N_SPEAKER = 4       # multi_speaker embedding table size
N_MEL = 16          # n_mel_channels
RES_CH = 32         # denoiser residual channels
RES_LAYERS = 2
DIFF_STEPS = 100    # diffusion timesteps
SPEC_MIN, SPEC_MAX = -4.0, 4.0

MM_DTYPE = jnp.bfloat16   # MXU input dtype (f32 accumulation everywhere)


# ----------------------------- tiny pallas helpers -----------------------------

def _fs(shape):
    """Full-array BlockSpec for a grid=(1,) fused kernel."""
    nd = len(shape)
    return pl.BlockSpec(shape, lambda i, _z=(0,) * nd: _z)


def fused_call(kernel_fn, out_shape, *arrays):
    """Single-step pallas_call: every operand is one full-array VMEM block."""
    if isinstance(out_shape, (tuple, list)):
        out_shape_arg = tuple(out_shape)
        out_specs = tuple(_fs(o.shape) for o in out_shape_arg)
    else:
        out_shape_arg = out_shape
        out_specs = _fs(out_shape.shape)
    return pl.pallas_call(
        kernel_fn,
        out_shape=out_shape_arg,
        grid=(1,),
        in_specs=[_fs(a.shape) for a in arrays],
        out_specs=out_specs,
        compiler_params=pltpu.CompilerParams(
            dimension_semantics=("arbitrary",),
            vmem_limit_bytes=32 * 1024 * 1024),
    )(*arrays)


# ----------------------------- in-kernel math helpers -----------------------------

def _mm(a, b):
    """bf16 MXU matmul with f32 accumulation (weights are stored bf16 already)."""
    return jnp.dot(a.astype(MM_DTYPE), b.astype(MM_DTYPE),
                   preferred_element_type=jnp.float32)


def _ln(z, g, b, eps=1e-5):
    mu = jnp.mean(z, axis=-1, keepdims=True)
    var = jnp.mean((z - mu) ** 2, axis=-1, keepdims=True)
    return (z - mu) * jax.lax.rsqrt(var + eps) * g + b


def _conv3(x, w_cat, bias, t_idx, seg_len, dil):
    """'same' kernel-3 conv over time on flattened [B*T, C] rows as ONE matmul.

    Time shifts are done in VMEM with pltpu.roll along the sublane axis; t_idx (= position
    within each length-`seg_len` segment) masks both the zero padding at sequence edges and
    any cross-sequence leakage.  The three taps are concatenated along lanes and multiplied
    against the pre-concatenated [3C, F] weight.
    """
    n_rows = x.shape[0]
    xp = jnp.where(t_idx >= dil, pltpu.roll(x, dil, axis=0), 0.0)                    # x[t-dil]
    xn = jnp.where(t_idx < seg_len - dil, pltpu.roll(x, n_rows - dil, axis=0), 0.0)  # x[t+dil]
    xcat = jnp.concatenate([xp, x, xn], axis=-1)                                     # [N, 3C]
    return _mm(xcat, w_cat) + bias


# ----------------------------- fused kernels -----------------------------

def _encoder_kernel(x_ref, kbias_ref, keep_ref, tidx_ref,
                    wqkv_ref, bqkv_ref, wo_ref, dvec_ref,
                    w1_ref, b1_ref, w2_ref,
                    o_ref, *, n_layers, n_heads, d_k, batch, seg_len, scale):
    """Whole TextEncoder (all FFT blocks).

    Matmuls run on flattened [B*T, D] rows; attention is batched [B, T, T].
    dvec_ref packs per-layer (bo, ln1_g, ln1_b, b2, ln2_g, ln2_b) as [L, 6, D].
    """
    x = x_ref[...]                       # [BT, D] f32
    kbias = kbias_ref[...]               # [B, 1, T] additive key-padding bias
    keep = keep_ref[...]                 # [BT, 1]   1.0 = valid position
    t_idx = tidx_ref[...]                # [BT, 1]   int32 position within each sequence
    bt = x.shape[0]
    hdk = n_heads * d_k

    for l in range(n_layers):
        dvec = dvec_ref[l]               # [6, D]
        # --- fused QKV projection: one matmul, static lane slices per head ---
        qkv = _mm(x, wqkv_ref[l]) + bqkv_ref[l]                      # [BT, 3*H*Dk]
        qkv3 = qkv.reshape(batch, seg_len, 3 * hdk).astype(MM_DTYPE)  # hoisted bf16 cast
        heads = []
        for h in range(n_heads):
            q = qkv3[:, :, h * d_k:(h + 1) * d_k]
            k = qkv3[:, :, hdk + h * d_k:hdk + (h + 1) * d_k]
            v = qkv3[:, :, 2 * hdk + h * d_k:2 * hdk + (h + 1) * d_k]
            s = jnp.einsum("bqd,bkd->bqk", q, k,
                           preferred_element_type=jnp.float32)       # [B, T, T]
            s = s * scale + kbias
            s = s - jnp.max(s, axis=-1, keepdims=True)
            p = jnp.exp(s)
            p = p * pl.reciprocal(jnp.sum(p, axis=-1, keepdims=True), approx=True)
            o_h = jnp.einsum("bqk,bkd->bqd", p.astype(MM_DTYPE), v,
                             preferred_element_type=jnp.float32)      # [B, T, Dk]
            heads.append(o_h)
        o_cat = jnp.concatenate(heads, axis=-1).reshape(bt, hdk)      # [BT, H*Dk]
        attn = _mm(o_cat, wo_ref[l]) + dvec[0:1]                      # single output proj
        x1 = _ln(x + attn, dvec[1:2], dvec[2:3]) * keep
        # TODO(synk): nn.Dropout layers skipped (eval-mode semantics).

        # --- position-wise conv feed-forward (kernel 3 -> relu -> kernel 1) ---
        h1 = _conv3(x1, w1_ref[l], b1_ref[l], t_idx, seg_len, 1)
        h1 = jnp.maximum(h1, 0.0)
        h2 = _mm(h1, w2_ref[l]) + dvec[3:4]
        x = _ln(x1 + h2, dvec[4:5], dvec[5:6]) * keep

    o_ref[...] = x


def _varpred_kernel(x_ref, keep_ref, tidx_ref,
                    w1_ref, w2_ref, vec_ref, wo_ref, bo_ref,
                    o_ref, *, seg_len):
    """Duration + pitch + energy predictors fused; single lane-contiguous [BT, 3] output.

    vec_ref packs per-predictor (b1, g1, be1, b2, g2, be2) as [3, 6, F].
    """
    x = x_ref[...]                       # [BT, D]
    keep = keep_ref[...]                 # [BT, 1]
    t_idx = tidx_ref[...]                # [BT, 1]
    cols = []
    for p in range(3):
        vec = vec_ref[p]                 # [6, F]
        h = _conv3(x, w1_ref[p], vec[0:1], t_idx, seg_len, 1)
        h = jnp.maximum(h, 0.0)
        h = _ln(h, vec[1:2], vec[2:3])
        h = _conv3(h, w2_ref[p], vec[3:4], t_idx, seg_len, 1)
        h = jnp.maximum(h, 0.0)
        h = _ln(h, vec[4:5], vec[5:6])
        # final F->1 linear as a lane reduction (wo stored pre-transposed as [1, F], f32)
        cols.append(jnp.sum(h * wo_ref[p], axis=-1, keepdims=True) + bo_ref[p])
    o_ref[...] = jnp.concatenate(cols, axis=-1) * keep       # [BT, 3] packed writeback


def _denoiser_kernel(xt_ref, cond_ref, emb_ref, tidx_ref,
                     inw_ref, inb_ref, m1w_ref, m1b_ref, m2w_ref, m2b_ref,
                     dw_ref, db_ref, cw_ref, cb_ref,
                     xw_ref, xb_ref, ow_ref, ob_ref,
                     skw_ref, skb_ref, fw_ref, fb_ref,
                     o_ref, *, n_layers, res_ch, seg_len):
    """Whole diffusion denoiser on flattened [B*M, C] rows.

    cw_ref packs the tanh/sigmoid conv halves as [Ld, 3R, 2R]; xw_ref packs ALL layers'
    conditioner projections as [D, Ld*2R] (computed once, lane-dense 128-wide output);
    ow_ref packs residual/skip output projections as [Ld, R, 2R].
    """
    xt = xt_ref[...]                     # [BM, n_mel]
    cond = cond_ref[...]                 # [BM, D]  (loaded once, one matmul for all layers)
    emb = emb_ref[...]                   # [BM, R]  sinusoidal step embedding expanded to rows
    t_idx = tidx_ref[...]                # [BM, 1]
    r = res_ch

    x = jnp.maximum(_mm(xt, inw_ref[...]) + inb_ref[...], 0.0)      # input 1x1 conv + relu

    def mish(z):
        # numerically stable softplus: log(1 + exp(-|z|)) + max(z, 0)
        sp = jnp.log(1.0 + jnp.exp(-jnp.abs(z))) + jnp.maximum(z, 0.0)
        return z * jnp.tanh(sp)

    e = mish(_mm(emb, m1w_ref[...]) + m1b_ref[...])
    e = mish(_mm(e, m2w_ref[...]) + m2b_ref[...])                   # [BM, R]

    # all-layer conditioner projection in ONE matmul -> [BM, Ld*2R] (128 lanes)
    cond_all = _mm(cond, xw_ref[...]) + xb_ref[...]

    skip = jnp.zeros_like(x)
    inv_sqrt2 = 1.0 / math.sqrt(2.0)
    for l in range(n_layers):
        dil = 2 ** l
        d_l = _mm(e, dw_ref[l]) + db_ref[l]                         # per-row step embedding
        h = x + d_l
        # dilated kernel-3 conv, tanh/sigmoid halves fused into one 2R-wide matmul
        y = _conv3(h, cw_ref[l], cb_ref[l], t_idx, seg_len, dil)    # [BM, 2R]
        y = y + cond_all[:, l * 2 * r:(l + 1) * 2 * r]
        ya = y[:, :r]
        yb = y[:, r:]
        gate = jnp.tanh(ya) * pl.reciprocal(1.0 + jnp.exp(-yb), approx=True)
        o2 = _mm(gate, ow_ref[l]) + ob_ref[l]                       # [BM, 2R] res|skip
        x = (x + o2[:, :r]) * inv_sqrt2
        skip = skip + o2[:, r:]

    skip = skip * (1.0 / math.sqrt(n_layers))
    hh = jnp.maximum(_mm(skip, skw_ref[...]) + skb_ref[...], 0.0)
    o_ref[...] = _mm(hh, fw_ref[...]) + fb_ref[...]


# ----------------------------- JAX glue ops -----------------------------

def get_mask_from_lengths(lengths, max_len):
    ids = jnp.arange(max_len)
    return ids[None, :] >= lengths[:, None]     # True = padded


def sinusoid_table(n_pos, d):
    # TODO(synk): fixed 64-position table caps max_src_len at 64 (matches the tiny test config).
    pos = jnp.arange(n_pos, dtype=jnp.float32)[:, None]
    i = jnp.arange(d)[None, :]
    angle = pos / jnp.power(10000.0, (2.0 * (i // 2)) / d)
    return jnp.where(i % 2 == 0, jnp.sin(angle), jnp.cos(angle)).astype(jnp.float32)


def _time_index(seq_len, batch):
    return jnp.tile(jnp.arange(seq_len, dtype=jnp.int32), batch).reshape(batch * seq_len, 1)


# ----------------------------- parameter init (deterministic) -----------------------------

def init_params(key):
    keys = iter(jax.random.split(key, 128))

    def nxt():
        return next(keys)

    def u(shape, fan_in, fan_out, dtype=MM_DTYPE):
        lim = math.sqrt(6.0 / (fan_in + fan_out))
        return jax.random.uniform(nxt(), shape, jnp.float32, -lim, lim).astype(dtype)

    def zeros(shape):
        return jnp.zeros(shape, jnp.float32)

    def emb(n, d):
        return 0.1 * jax.random.normal(nxt(), (n, d), jnp.float32)

    # packed bias/LN slab pattern: rows = (bias0, gamma1, beta1, bias2, gamma2, beta2)
    ln_pat = jnp.array([0.0, 1.0, 0.0, 0.0, 1.0, 0.0], jnp.float32)

    p = {}
    p["word_emb"] = emb(VOCAB, D_MODEL).at[0].set(0.0)          # padding_idx=0
    p["pos_enc"] = sinusoid_table(64, D_MODEL)
    p["speaker_emb"] = emb(N_SPEAKER, D_MODEL)                  # multi_speaker (speakers.json replaced)

    L, H = ENC_LAYERS, N_HEADS
    p["enc"] = {
        # fused QKV weight: [L, D, 3*H*Dk]
        "wqkv": u((L, D_MODEL, 3 * H * D_K), D_MODEL, H * D_K),
        "bqkv": zeros((L, 1, 3 * H * D_K)),
        # single output projection per layer: [L, H*Dk, D]
        "wo": u((L, H * D_K, D_MODEL), H * D_K, D_MODEL),
        # packed (bo, ln1_g, ln1_b, b2, ln2_g, ln2_b): [L, 6, D]
        "dvec": jnp.tile(ln_pat[None, :, None], (L, 1, D_MODEL)),
        # kernel-3 conv taps pre-concatenated: [L, 3*D, F]
        "w1": u((L, 3 * D_MODEL, FFT_FILTER), FFT_KERNEL * D_MODEL, FFT_FILTER),
        "b1": zeros((L, 1, FFT_FILTER)),
        "w2": u((L, FFT_FILTER, D_MODEL), FFT_FILTER, D_MODEL),
    }

    P = 3
    p["vp"] = {
        "w1": u((P, 3 * D_MODEL, VP_FILTER), VP_KERNEL * D_MODEL, VP_FILTER),
        "w2": u((P, 3 * VP_FILTER, VP_FILTER), VP_KERNEL * VP_FILTER, VP_FILTER),
        # packed (b1, g1, be1, b2, g2, be2): [P, 6, F]
        "vec": jnp.tile(ln_pat[None, :, None], (P, 1, VP_FILTER)),
        "wo": u((P, 1, VP_FILTER), VP_FILTER, 1, dtype=jnp.float32),   # used elementwise (f32)
        "bo": zeros((P, 1, 1)),
    }

    p["pitch_emb"] = emb(N_BINS, D_MODEL)
    p["energy_emb"] = emb(N_BINS, D_MODEL)
    p["pitch_bins"] = jnp.linspace(-4.0, 4.0, N_BINS - 1)
    p["energy_bins"] = jnp.linspace(-4.0, 4.0, N_BINS - 1)

    R, Ld = RES_CH, RES_LAYERS
    p["den"] = {
        "in_w": u((N_MEL, R), N_MEL, R), "in_b": zeros((1, R)),
        "mlp1_w": u((R, 4 * R), R, 4 * R), "mlp1_b": zeros((1, 4 * R)),
        "mlp2_w": u((4 * R, R), 4 * R, R), "mlp2_b": zeros((1, R)),
        "diff_w": u((Ld, R, R), R, R), "diff_b": zeros((Ld, 1, R)),
        # dilated conv taps concatenated + tanh/sigmoid halves fused: [Ld, 3R, 2R]
        "conv_w": u((Ld, 3 * R, 2 * R), 3 * R, 2 * R), "conv_b": zeros((Ld, 1, 2 * R)),
        # all-layer conditioner projection: [D, Ld*2R]  (lane-dense 128-wide output)
        "cond_w": u((D_MODEL, Ld * 2 * R), D_MODEL, 2 * R), "cond_b": zeros((1, Ld * 2 * R)),
        # residual/skip output projections fused: [Ld, R, 2R]
        "out_w": u((Ld, R, 2 * R), R, 2 * R), "out_b": zeros((Ld, 1, 2 * R)),
        "skip_w": u((R, R), R, R), "skip_b": zeros((1, R)),
        "final_w": u((R, N_MEL), R, N_MEL), "final_b": zeros((1, N_MEL)),
    }

    betas = jnp.linspace(1e-4, 0.06, DIFF_STEPS)
    p["alphas_cumprod"] = jnp.cumprod(1.0 - betas)
    return p


# ----------------------------- model components -----------------------------

def text_encoder(params, texts, src_masks):
    B, T = texts.shape
    x = params["word_emb"][texts] + params["pos_enc"][None, :T, :]     # gather in XLA glue
    x2 = x.reshape(B * T, D_MODEL).astype(jnp.float32)
    keep = (~src_masks).astype(jnp.float32).reshape(B * T, 1)
    # key-padding additive bias per batch (tiny [B, 1, T]; no O((B*T)^2) array)
    key_bias = jnp.where(src_masks, -1e9, 0.0).astype(jnp.float32)[:, None, :]
    t_idx = _time_index(T, B)

    enc = params["enc"]
    out = fused_call(
        functools.partial(_encoder_kernel, n_layers=ENC_LAYERS, n_heads=N_HEADS,
                          d_k=D_K, batch=B, seg_len=T, scale=1.0 / math.sqrt(D_K)),
        jax.ShapeDtypeStruct((B * T, D_MODEL), jnp.float32),
        x2, key_bias, keep, t_idx,
        enc["wqkv"], enc["bqkv"], enc["wo"], enc["dvec"],
        enc["w1"], enc["b1"], enc["w2"])
    return out.reshape(B, T, D_MODEL)


def length_regulator(x, durations, max_mel_len):
    # TODO(synk): data-dependent expand/gather kept in XLA glue (no clean Pallas equivalent).
    B, T, D = x.shape
    cum = jnp.cumsum(durations, axis=-1)
    frames = jnp.arange(max_mel_len)
    idx = jax.vmap(lambda c: jnp.searchsorted(c, frames, side="right"))(cum)
    idx = jnp.clip(idx, 0, T - 1)
    out = jax.vmap(lambda xb, ib: xb[ib])(x, idx)
    mel_lens = cum[:, -1]
    out = jnp.where(frames[None, :, None] >= mel_lens[:, None, None], 0.0, out)
    return out, mel_lens


def variance_adaptor(params, x, src_masks, max_mel_len,
                     p_targets, e_targets, d_targets,
                     p_control, e_control, d_control):
    B, T, D = x.shape
    x2 = x.reshape(B * T, D).astype(jnp.float32)
    keep = (~src_masks).astype(jnp.float32).reshape(B * T, 1)
    t_idx = _time_index(T, B)

    vp = params["vp"]
    preds = fused_call(
        functools.partial(_varpred_kernel, seg_len=T),
        jax.ShapeDtypeStruct((B * T, 3), jnp.float32),
        x2, keep, t_idx,
        vp["w1"], vp["w2"], vp["vec"], vp["wo"], vp["bo"])
    log_d_pred = preds[:, 0].reshape(B, T)
    p_pred = preds[:, 1].reshape(B, T)
    e_pred = preds[:, 2].reshape(B, T)

    p_used = p_targets if p_targets is not None else p_pred * p_control
    p_bucket = jnp.clip(jnp.searchsorted(params["pitch_bins"], p_used), 0, N_BINS - 1)
    x = x + params["pitch_emb"][p_bucket]

    e_used = e_targets if e_targets is not None else e_pred * e_control
    e_bucket = jnp.clip(jnp.searchsorted(params["energy_bins"], e_used), 0, N_BINS - 1)
    x = x + params["energy_emb"][e_bucket]

    if d_targets is not None:
        d_rounded = d_targets
    else:
        d_rounded = jnp.clip(jnp.round((jnp.exp(log_d_pred) - 1.0) * d_control),
                             0, None).astype(jnp.int32)

    x, mel_lens = length_regulator(x, d_rounded, max_mel_len)
    mel_masks = get_mask_from_lengths(mel_lens, max_mel_len)
    return x, p_pred, e_pred, log_d_pred, d_rounded, mel_lens, mel_masks


def denoiser_forward(den, x_t, t, cond):
    B, M, _ = x_t.shape
    half = RES_CH // 2
    freqs = jnp.exp(-math.log(10000.0) * jnp.arange(half) / (half - 1))
    ang = t[:, None].astype(jnp.float32) * freqs[None, :]
    emb0 = jnp.concatenate([jnp.sin(ang), jnp.cos(ang)], axis=-1)     # [B, R]
    emb_rows = jnp.repeat(emb0, M, axis=0)                            # [B*M, R] (no sel matmul)
    t_idx = _time_index(M, B)

    out = fused_call(
        functools.partial(_denoiser_kernel, n_layers=RES_LAYERS, res_ch=RES_CH, seg_len=M),
        jax.ShapeDtypeStruct((B * M, N_MEL), jnp.float32),
        x_t.reshape(B * M, N_MEL).astype(jnp.float32),
        cond.reshape(B * M, D_MODEL).astype(jnp.float32),
        emb_rows, t_idx,
        den["in_w"], den["in_b"], den["mlp1_w"], den["mlp1_b"], den["mlp2_w"], den["mlp2_b"],
        den["diff_w"], den["diff_b"],
        den["conv_w"], den["conv_b"],
        den["cond_w"], den["cond_b"],
        den["out_w"], den["out_b"],
        den["skip_w"], den["skip_b"], den["final_w"], den["final_b"])
    return out.reshape(B, M, N_MEL)


def gaussian_diffusion(params, key, mels, cond, mel_masks):
    B = mels.shape[0]
    kt, kn = jax.random.split(key)
    t = jax.random.randint(kt, (B,), 0, DIFF_STEPS)
    x0 = jnp.clip((mels - SPEC_MIN) / (SPEC_MAX - SPEC_MIN) * 2.0 - 1.0, -1.0, 1.0)
    noise = jax.random.normal(kn, x0.shape, jnp.float32)
    a_bar = params["alphas_cumprod"][t][:, None, None]
    x_t = jnp.sqrt(a_bar) * x0 + jnp.sqrt(1.0 - a_bar) * noise
    eps_pred = denoiser_forward(params["den"], x_t, t, cond)
    w = (~mel_masks).astype(jnp.float32)[..., None]
    noise_loss = jnp.sum(jnp.abs(eps_pred - noise) * w) / (jnp.sum(w) * N_MEL + 1e-8)
    # TODO(synk): reverse (inference) sampling loop when mels is None is not implemented.
    return x_t, eps_pred, noise_loss, t


# ----------------------------- DiffSinger forward -----------------------------

def diffsinger_forward(params, key, speakers, texts, src_lens, max_src_len,
                       mels=None, mel_lens=None, max_mel_len=None,
                       p_targets=None, e_targets=None, d_targets=None,
                       p_control=1.0, e_control=1.0, d_control=1.0):
    src_masks = get_mask_from_lengths(src_lens, max_src_len)
    _ = get_mask_from_lengths(mel_lens, max_mel_len) if mel_lens is not None else None

    output = text_encoder(params, texts, src_masks)
    print("diffsinger.py::forward  src lens", src_lens,
          " text encoded output shape ", output.shape)

    # multi_speaker branch (embedding gather in XLA glue)
    output = output + params["speaker_emb"][speakers][:, None, :]

    (output, p_pred, e_pred, log_d_pred, d_rounded,
     mel_lens_out, mel_masks) = variance_adaptor(
        params, output, src_masks, max_mel_len,
        p_targets, e_targets, d_targets, p_control, e_control, d_control)

    output, eps_pred, noise_loss, diffusion_step = gaussian_diffusion(
        params, key, mels, output, mel_masks)

    return (output, eps_pred, noise_loss, diffusion_step, p_pred, e_pred,
            log_d_pred, d_rounded, src_masks, mel_masks, src_lens, mel_lens_out)


# ----------------------------- main -----------------------------

if __name__ == "__main__":
    key = jax.random.PRNGKey(0)
    ks = jax.random.split(key, 8)
    params = init_params(ks[0])

    B, T_SRC, MAX_MEL = 2, 8, 16
    src_lens = jnp.array([8, 6], jnp.int32)
    valid = jnp.arange(T_SRC)[None, :] < src_lens[:, None]

    texts = jax.random.randint(ks[1], (B, T_SRC), 1, VOCAB)
    texts = jnp.where(valid, texts, 0)
    speakers = jnp.array([0, 1], jnp.int32)

    d_targets = jax.random.randint(ks[2], (B, T_SRC), 1, 3)
    d_targets = jnp.where(valid, d_targets, 0)
    mel_lens = jnp.sum(d_targets, axis=-1)

    p_targets = jax.random.normal(ks[3], (B, T_SRC), jnp.float32)
    e_targets = jax.random.normal(ks[4], (B, T_SRC), jnp.float32)
    mels = jax.random.normal(ks[5], (B, MAX_MEL, N_MEL), jnp.float32)

    outs = diffsinger_forward(params, ks[6], speakers, texts, src_lens, T_SRC,
                              mels=mels, mel_lens=mel_lens, max_mel_len=MAX_MEL,
                              p_targets=p_targets, e_targets=e_targets,
                              d_targets=d_targets)
    jax.block_until_ready(outs)
    print("KERNEL_OK")
</pallas_src>

<mosaic_0001>
module attributes {stable_mosaic.version = 11 : i64} {
  func.func @_encoder_kernel(%arg0: i32, %arg1: memref<16x32xf32, #tpu.memory_space<vmem>>, %arg2: memref<2x1x8xf32, #tpu.memory_space<vmem>>, %arg3: memref<16x1xf32, #tpu.memory_space<vmem>>, %arg4: memref<16x1xi32, #tpu.memory_space<vmem>>, %arg5: memref<2x32x96xbf16, #tpu.memory_space<vmem>>, %arg6: memref<2x1x96xf32, #tpu.memory_space<vmem>>, %arg7: memref<2x32x32xbf16, #tpu.memory_space<vmem>>, %arg8: memref<2x6x32xf32, #tpu.memory_space<vmem>>, %arg9: memref<2x96x64xbf16, #tpu.memory_space<vmem>>, %arg10: memref<2x1x64xf32, #tpu.memory_space<vmem>>, %arg11: memref<2x64x32xbf16, #tpu.memory_space<vmem>>, %arg12: memref<16x32xf32, #tpu.memory_space<vmem>>) attributes {dimension_semantics = [#tpu.dimension_semantics<arbitrary>], iteration_bounds = array<i64: 1>, scalar_prefetch = 0 : i64, scratch_operands = 0 : i64, tpu.core_type = #tpu.core_type<tc>, window_params = [{pipeline_mode = #tpu.pipeline_mode<synchronous>, transform_indices = @transform_0, window_bounds = array<i64: 16, 32>}, {pipeline_mode = #tpu.pipeline_mode<synchronous>, transform_indices = @transform_1, window_bounds = array<i64: 2, 1, 8>}, {pipeline_mode = #tpu.pipeline_mode<synchronous>, transform_indices = @transform_2, window_bounds = array<i64: 16, 1>}, {pipeline_mode = #tpu.pipeline_mode<synchronous>, transform_indices = @transform_3, window_bounds = array<i64: 16, 1>}, {pipeline_mode = #tpu.pipeline_mode<synchronous>, transform_indices = @transform_4, window_bounds = array<i64: 2, 32, 96>}, {pipeline_mode = #tpu.pipeline_mode<synchronous>, transform_indices = @transform_5, window_bounds = array<i64: 2, 1, 96>}, {pipeline_mode = #tpu.pipeline_mode<synchronous>, transform_indices = @transform_6, window_bounds = array<i64: 2, 32, 32>}, {pipeline_mode = #tpu.pipeline_mode<synchronous>, transform_indices = @transform_7, window_bounds = array<i64: 2, 6, 32>}, {pipeline_mode = #tpu.pipeline_mode<synchronous>, transform_indices = @transform_8, window_bounds = array<i64: 2, 96, 64>}, {pipeline_mode = #tpu.pipeline_mode<synchronous>, transform_indices = @transform_9, window_bounds = array<i64: 2, 1, 64>}, {pipeline_mode = #tpu.pipeline_mode<synchronous>, transform_indices = @transform_10, window_bounds = array<i64: 2, 64, 32>}, {pipeline_mode = #tpu.pipeline_mode<synchronous>, transform_indices = @transform_11, window_bounds = array<i64: 16, 32>}]} {
    %c0 = arith.constant 0 : index
    %c0_0 = arith.constant 0 : index
    %0 = vector.load %arg1[%c0, %c0_0] : memref<16x32xf32, #tpu.memory_space<vmem>>, vector<16x32xf32>
    %c0_1 = arith.constant 0 : index
    %c0_2 = arith.constant 0 : index
    %c0_3 = arith.constant 0 : index
    %1 = vector.load %arg2[%c0_1, %c0_2, %c0_3] : memref<2x1x8xf32, #tpu.memory_space<vmem>>, vector<2x1x8xf32>
    %c0_4 = arith.constant 0 : index
    %c0_5 = arith.constant 0 : index
    %2 = vector.load %arg3[%c0_4, %c0_5] : memref<16x1xf32, #tpu.memory_space<vmem>>, vector<16x1xf32>
    %c0_6 = arith.constant 0 : index
    %c0_7 = arith.constant 0 : index
    %3 = vector.load %arg4[%c0_6, %c0_7] : memref<16x1xi32, #tpu.memory_space<vmem>>, vector<16x1xi32>
    %c0_8 = arith.constant 0 : index
    %c0_9 = arith.constant 0 : index
    %c0_10 = arith.constant 0 : index
    %4 = vector.load %arg8[%c0_8, %c0_9, %c0_10] : memref<2x6x32xf32, #tpu.memory_space<vmem>>, vector<1x6x32xf32>
    %5 = vector.shape_cast %4 : vector<1x6x32xf32> to vector<6x32xf32>
    %c0_11 = arith.constant 0 : index
    %c0_12 = arith.constant 0 : index
    %c0_13 = arith.constant 0 : index
    %6 = vector.load %arg5[%c0_11, %c0_12, %c0_13] : memref<2x32x96xbf16, #tpu.memory_space<vmem>>, vector<1x32x96xbf16>
    %7 = vector.shape_cast %6 : vector<1x32x96xbf16> to vector<32x96xbf16>
    %8 = arith.truncf %0 : vector<16x32xf32> to vector<16x32xbf16>
    %cst = arith.constant dense<0.000000e+00> : vector<16x96xf32>
    %9 = tpu.matmul %8, %7, %cst {dimension_numbers = #tpu.dot_dimension_numbers<[1], [0], [0], [1], [0, 0, 1, 1], [], []>} : vector<16x32xbf16>, vector<32x96xbf16>, vector<16x96xf32> -> vector<16x96xf32>
    %c0_14 = arith.constant 0 : index
    %c0_15 = arith.constant 0 : index
    %c0_16 = arith.constant 0 : index
    %10 = vector.load %arg6[%c0_14, %c0_15, %c0_16] : memref<2x1x96xf32, #tpu.memory_space<vmem>>, vector<1x1x96xf32>
    %11 = vector.shape_cast %10 : vector<1x1x96xf32> to vector<1x96xf32>
    %12 = vector.broadcast %11 : vector<1x96xf32> to vector<16x96xf32>
    %13 = arith.addf %9, %12 : vector<16x96xf32>
    %14 = vector.shape_cast %13 : vector<16x96xf32> to vector<2x8x96xf32>
    %15 = arith.truncf %14 : vector<2x8x96xf32> to vector<2x8x96xbf16>
    %16 = vector.extract_strided_slice %15 {offsets = [0, 0, 0], sizes = [2, 8, 16], strides = [1, 1, 1]} : vector<2x8x96xbf16> to vector<2x8x16xbf16>
    %17 = vector.extract_strided_slice %15 {offsets = [0, 0, 32], sizes = [2, 8, 16], strides = [1, 1, 1]} : vector<2x8x96xbf16> to vector<2x8x16xbf16>
    %18 = vector.extract_strided_slice %15 {offsets = [0, 0, 64], sizes = [2, 8, 16], strides = [1, 1, 1]} : vector<2x8x96xbf16> to vector<2x8x16xbf16>
    "tpu.trace_start"() <{level = 10 : i32, message = "bqd,bkd->bqk"}> : () -> ()
    %cst_17 = arith.constant dense<0.000000e+00> : vector<2x8x8xf32>
    %19 = tpu.matmul %16, %17, %cst_17 {dimension_numbers = #tpu.dot_dimension_numbers<[2], [2], [1], [1], [0, 0, 0, 1, 1, 1], [0], [0]>} : vector<2x8x16xbf16>, vector<2x8x16xbf16>, vector<2x8x8xf32> -> vector<2x8x8xf32>
    "tpu.trace_stop"() : () -> ()
    %cst_18 = arith.constant 2.500000e-01 : f32
    %20 = vector.broadcast %cst_18 : f32 to vector<2x8x8xf32>
    %21 = arith.mulf %19, %20 : vector<2x8x8xf32>
    %22 = vector.broadcast %1 : vector<2x1x8xf32> to vector<2x8x8xf32>
    %23 = arith.addf %21, %22 : vector<2x8x8xf32>
    %cst_19 = arith.constant dense<0xFF800000> : vector<2x8xf32>
    %24 = vector.multi_reduction <maximumf>, %23, %cst_19 [2] : vector<2x8x8xf32> to vector<2x8xf32>
    %25 = vector.shape_cast %24 : vector<2x8xf32> to vector<2x8x1xf32>
    %26 = vector.broadcast %25 : vector<2x8x1xf32> to vector<2x8x8xf32>
    %27 = arith.subf %23, %26 : vector<2x8x8xf32>
    %28 = math.exp %27 : vector<2x8x8xf32>
    %cst_20 = arith.constant dense<0.000000e+00> : vector<2x8xf32>
    %29 = vector.multi_reduction <add>, %28, %cst_20 [2] : vector<2x8x8xf32> to vector<2x8xf32>
    %30 = vector.shape_cast %29 : vector<2x8xf32> to vector<2x8x1xf32>
    %31 = tpu.reciprocal %30 {approx = true} : vector<2x8x1xf32> -> vector<2x8x1xf32>
    %32 = vector.broadcast %31 : vector<2x8x1xf32> to vector<2x8x8xf32>
    %33 = arith.mulf %28, %32 : vector<2x8x8xf32>
    %34 = arith.truncf %33 : vector<2x8x8xf32> to vector<2x8x8xbf16>
    "tpu.trace_start"() <{level = 10 : i32, message = "bqk,bkd->bqd"}> : () -> ()
    %cst_21 = arith.constant dense<0.000000e+00> : vector<2x8x16xf32>
    %35 = tpu.matmul %34, %18, %cst_21 {dimension_numbers = #tpu.dot_dimension_numbers<[2], [1], [1], [2], [0, 0, 0, 1, 1, 2], [0], [0]>} : vector<2x8x8xbf16>, vector<2x8x16xbf16>, vector<2x8x16xf32> -> vector<2x8x16xf32>
    "tpu.trace_stop"() : () -> ()
    %36 = vector.extract_strided_slice %15 {offsets = [0, 0, 16], sizes = [2, 8, 16], strides = [1, 1, 1]} : vector<2x8x96xbf16> to vector<2x8x16xbf16>
    %37 = vector.extract_strided_slice %15 {offsets = [0, 0, 48], sizes = [2, 8, 16], strides = [1, 1, 1]} : vector<2x8x96xbf16> to vector<2x8x16xbf16>
    %38 = vector.extract_strided_slice %15 {offsets = [0, 0, 80], sizes = [2, 8, 16], strides = [1, 1, 1]} : vector<2x8x96xbf16> to vector<2x8x16xbf16>
    "tpu.trace_start"() <{level = 10 : i32, message = "bqd,bkd->bqk"}> : () -> ()
    %cst_22 = arith.constant dense<0.000000e+00> : vector<2x8x8xf32>
    %39 = tpu.matmul %36, %37, %cst_22 {dimension_numbers = #tpu.dot_dimension_numbers<[2], [2], [1], [1], [0, 0, 0, 1, 1, 1], [0], [0]>} : vector<2x8x16xbf16>, vector<2x8x16xbf16>, vector<2x8x8xf32> -> vector<2x8x8xf32>
    "tpu.trace_stop"() : () -> ()
    %cst_23 = arith.constant 2.500000e-01 : f32
    %40 = vector.broadcast %cst_23 : f32 to vector<2x8x8xf32>
    %41 = arith.mulf %39, %40 : vector<2x8x8xf32>
    %42 = vector.broadcast %1 : vector<2x1x8xf32> to vector<2x8x8xf32>
    %43 = arith.addf %41, %42 : vector<2x8x8xf32>
    %cst_24 = arith.constant dense<0xFF800000> : vector<2x8xf32>
    %44 = vector.multi_reduction <maximumf>, %43, %cst_24 [2] : vector<2x8x8xf32> to vector<2x8xf32>
    %45 = vector.shape_cast %44 : vector<2x8xf32> to vector<2x8x1xf32>
    %46 = vector.broadcast %45 : vector<2x8x1xf32> to vector<2x8x8xf32>
    %47 = arith.subf %43, %46 : vector<2x8x8xf32>
    %48 = math.exp %47 : vector<2x8x8xf32>
    %cst_25 = arith.constant dense<0.000000e+00> : vector<2x8xf32>
    %49 = vector.multi_reduction <add>, %48, %cst_25 [2] : vector<2x8x8xf32> to vector<2x8xf32>
    %50 = vector.shape_cast %49 : vector<2x8xf32> to vector<2x8x1xf32>
    %51 = tpu.reciprocal %50 {approx = true} : vector<2x8x1xf32> -> vector<2x8x1xf32>
    %52 = vector.broadcast %51 : vector<2x8x1xf32> to vector<2x8x8xf32>
    %53 = arith.mulf %48, %52 : vector<2x8x8xf32>
    %54 = arith.truncf %53 : vector<2x8x8xf32> to vector<2x8x8xbf16>
    "tpu.trace_start"() <{level = 10 : i32, message = "bqk,bkd->bqd"}> : () -> ()
    %cst_26 = arith.constant dense<0.000000e+00> : vector<2x8x16xf32>
    %55 = tpu.matmul %54, %38, %cst_26 {dimension_numbers = #tpu.dot_dimension_numbers<[2], [1], [1], [2], [0, 0, 0, 1, 1, 2], [0], [0]>} : vector<2x8x8xbf16>, vector<2x8x16xbf16>, vector<2x8x16xf32> -> vector<2x8x16xf32>
    "tpu.trace_stop"() : () -> ()
    %56 = tpu.concatenate %35, %55 in 2 : vector<2x8x16xf32>, vector<2x8x16xf32> -> vector<2x8x32xf32>
    %57 = vector.shape_cast %56 : vector<2x8x32xf32> to vector<16x32xf32>
    %c0_27 = arith.constant 0 : index
    %c0_28 = arith.constant 0 : index
    %c0_29 = arith.constant 0 : index
    %58 = vector.load %arg7[%c0_27, %c0_28, %c0_29] : memref<2x32x32xbf16, #tpu.memory_space<vmem>>, vector<1x32x32xbf16>
    %59 = vector.shape_cast %58 : vector<1x32x32xbf16> to vector<32x32xbf16>
    %60 = arith.truncf %57 : vector<16x32xf32> to vector<16x32xbf16>
    %cst_30 = arith.constant dense<0.000000e+00> : vector<16x32xf32>
    %61 = tpu.matmul %60, %59, %cst_30 {dimension_numbers = #tpu.dot_dimension_numbers<[1], [0], [0], [1], [0, 0, 1, 1], [], []>} : vector<16x32xbf16>, vector<32x32xbf16>, vector<16x32xf32> -> vector<16x32xf32>
    %62 = vector.extract_strided_slice %5 {offsets = [0, 0], sizes = [1, 32], strides = [1, 1]} : vector<6x32xf32> to vector<1x32xf32>
    %63 = vector.broadcast %62 : vector<1x32xf32> to vector<16x32xf32>
    %64 = arith.addf %61, %63 : vector<16x32xf32>
    %65 = arith.addf %0, %64 : vector<16x32xf32>
    %66 = vector.extract_strided_slice %5 {offsets = [1, 0], sizes = [1, 32], strides = [1, 1]} : vector<6x32xf32> to vector<1x32xf32>
    %67 = vector.extract_strided_slice %5 {offsets = [2, 0], sizes = [1, 32], strides = [1, 1]} : vector<6x32xf32> to vector<1x32xf32>
    %cst_31 = arith.constant dense<0.000000e+00> : vector<16xf32>
    %68 = vector.multi_reduction <add>, %65, %cst_31 [1] : vector<16x32xf32> to vector<16xf32>
    %69 = vector.shape_cast %68 : vector<16xf32> to vector<16x1xf32>
    %cst_32 = arith.constant 3.200000e+01 : f32
    %70 = vector.broadcast %cst_32 : f32 to vector<16x1xf32>
    %71 = arith.divf %69, %70 : vector<16x1xf32>
    %72 = vector.broadcast %71 : vector<16x1xf32> to vector<16x32xf32>
    %73 = arith.subf %65, %72 : vector<16x32xf32>
    %74 = arith.mulf %73, %73 : vector<16x32xf32>
    %cst_33 = arith.constant dense<0.000000e+00> : vector<16xf32>
    %75 = vector.multi_reduction <add>, %74, %cst_33 [1] : vector<16x32xf32> to vector<16xf32>
    %76 = vector.shape_cast %75 : vector<16xf32> to vector<16x1xf32>
    %cst_34 = arith.constant 3.200000e+01 : f32
    %77 = vector.broadcast %cst_34 : f32 to vector<16x1xf32>
    %78 = arith.divf %76, %77 : vector<16x1xf32>
    %79 = vector.broadcast %71 : vector<16x1xf32> to vector<16x32xf32>
    %80 = arith.subf %65, %79 : vector<16x32xf32>
    %cst_35 = arith.constant 9.99999974E-6 : f32
    %81 = vector.broadcast %cst_35 : f32 to vector<16x1xf32>
    %82 = arith.addf %78, %81 : vector<16x1xf32>
    %83 = math.rsqrt %82 : vector<16x1xf32>
    %84 = vector.broadcast %83 : vector<16x1xf32> to vector<16x32xf32>
    %85 = arith.mulf %80, %84 : vector<16x32xf32>
    %86 = vector.broadcast %66 : vector<1x32xf32> to vector<16x32xf32>
    %87 = arith.mulf %85, %86 : vector<16x32xf32>
    %88 = vector.broadcast %67 : vector<1x32xf32> to vector<16x32xf32>
    %89 = arith.addf %87, %88 : vector<16x32xf32>
    %90 = vector.broadcast %2 : vector<16x1xf32> to vector<16x32xf32>
    %91 = arith.mulf %89, %90 : vector<16x32xf32>
    %c0_36 = arith.constant 0 : index
    %c0_37 = arith.constant 0 : index
    %c0_38 = arith.constant 0 : index
    %92 = vector.load %arg9[%c0_36, %c0_37, %c0_38] : memref<2x96x64xbf16, #tpu.memory_space<vmem>>, vector<1x96x64xbf16>
    %93 = vector.shape_cast %92 : vector<1x96x64xbf16> to vector<96x64xbf16>
    %c0_39 = arith.constant 0 : index
    %c0_40 = arith.constant 0 : index
    %c0_41 = arith.constant 0 : index
    %94 = vector.load %arg10[%c0_39, %c0_40, %c0_41] : memref<2x1x64xf32, #tpu.memory_space<vmem>>, vector<1x1x64xf32>
    %95 = vector.shape_cast %94 : vector<1x1x64xf32> to vector<1x64xf32>
    %c1_i32 = arith.constant 1 : i32
    %96 = vector.broadcast %c1_i32 : i32 to vector<16x1xi32>
    %97 = arith.cmpi sge, %3, %96 : vector<16x1xi32>
    %c1_i32_42 = arith.constant 1 : i32
    %98 = tpu.dynamic_rotate %91 by %c1_i32_42 dim 0 : vector<16x32xf32>, i32 -> vector<16x32xf32>
    %cst_43 = arith.constant 0.000000e+00 : f32
    %99 = vector.shape_cast %97 : vector<16x1xi1> to vector<16x1xi1>
    %100 = vector.broadcast %99 : vector<16x1xi1> to vector<16x32xi1>
    %101 = vector.broadcast %cst_43 : f32 to vector<16x32xf32>
    %102 = arith.select %100, %98, %101 : vector<16x32xi1>, vector<16x32xf32>
    %c7_i32 = arith.constant 7 : i32
    %103 = vector.broadcast %c7_i32 : i32 to vector<16x1xi32>
    %104 = arith.cmpi slt, %3, %103 : vector<16x1xi32>
    %c15_i32 = arith.constant 15 : i32
    %105 = tpu.dynamic_rotate %91 by %c15_i32 dim 0 : vector<16x32xf32>, i32 -> vector<16x32xf32>
    %cst_44 = arith.constant 0.000000e+00 : f32
    %106 = vector.shape_cast %104 : vector<16x1xi1> to vector<16x1xi1>
    %107 = vector.broadcast %106 : vector<16x1xi1> to vector<16x32xi1>
    %108 = vector.broadcast %cst_44 : f32 to vector<16x32xf32>
    %109 = arith.select %107, %105, %108 : vector<16x32xi1>, vector<16x32xf32>
    %110 = tpu.concatenate %102, %91, %109 in 1 : vector<16x32xf32>, vector<16x32xf32>, vector<16x32xf32> -> vector<16x96xf32>
    %111 = arith.truncf %110 : vector<16x96xf32> to vector<16x96xbf16>
    %cst_45 = arith.constant dense<0.000000e+00> : vector<16x64xf32>
    %112 = tpu.matmul %111, %93, %cst_45 {dimension_numbers = #tpu.dot_dimension_numbers<[1], [0], [0], [1], [0, 0, 1, 1], [], []>} : vector<16x96xbf16>, vector<96x64xbf16>, vector<16x64xf32> -> vector<16x64xf32>
    %113 = vector.broadcast %95 : vector<1x64xf32> to vector<16x64xf32>
    %114 = arith.addf %112, %113 : vector<16x64xf32>
    %cst_46 = arith.constant 0.000000e+00 : f32
    %115 = vector.broadcast %cst_46 : f32 to vector<16x64xf32>
    %116 = arith.maximumf %114, %115 : vector<16x64xf32>
    %c0_47 = arith.constant 0 : index
    %c0_48 = arith.constant 0 : index
    %c0_49 = arith.constant 0 : index
    %117 = vector.load %arg11[%c0_47, %c0_48, %c0_49] : memref<2x64x32xbf16, #tpu.memory_space<vmem>>, vector<1x64x32xbf16>
    %118 = vector.shape_cast %117 : vector<1x64x32xbf16> to vector<64x32xbf16>
    %119 = arith.truncf %116 : vector<16x64xf32> to vector<16x64xbf16>
    %cst_50 = arith.constant dense<0.000000e+00> : vector<16x32xf32>
    %120 = tpu.matmul %119, %118, %cst_50 {dimension_numbers = #tpu.dot_dimension_numbers<[1], [0], [0], [1], [0, 0, 1, 1], [], []>} : vector<16x64xbf16>, vector<64x32xbf16>, vector<16x32xf32> -> vector<16x32xf32>
    %121 = vector.extract_strided_slice %5 {offsets = [3, 0], sizes = [1, 32], strides = [1, 1]} : vector<6x32xf32> to vector<1x32xf32>
    %122 = vector.broadcast %121 : vector<1x32xf32> to vector<16x32xf32>
    %123 = arith.addf %120, %122 : vector<16x32xf32>
    %124 = arith.addf %91, %123 : vector<16x32xf32>
    %125 = vector.extract_strided_slice %5 {offsets = [4, 0], sizes = [1, 32], strides = [1, 1]} : vector<6x32xf32> to vector<1x32xf32>
    %126 = vector.extract_strided_slice %5 {offsets = [5, 0], sizes = [1, 32], strides = [1, 1]} : vector<6x32xf32> to vector<1x32xf32>
    %cst_51 = arith.constant dense<0.000000e+00> : vector<16xf32>
    %127 = vector.multi_reduction <add>, %124, %cst_51 [1] : vector<16x32xf32> to vector<16xf32>
    %128 = vector.shape_cast %127 : vector<16xf32> to vector<16x1xf32>
    %cst_52 = arith.constant 3.200000e+01 : f32
    %129 = vector.broadcast %cst_52 : f32 to vector<16x1xf32>
    %130 = arith.divf %128, %129 : vector<16x1xf32>
    %131 = vector.broadcast %130 : vector<16x1xf32> to vector<16x32xf32>
    %132 = arith.subf %124, %131 : vector<16x32xf32>
    %133 = arith.mulf %132, %132 : vector<16x32xf32>
    %cst_53 = arith.constant dense<0.000000e+00> : vector<16xf32>
    %134 = vector.multi_reduction <add>, %133, %cst_53 [1] : vector<16x32xf32> to vector<16xf32>
    %135 = vector.shape_cast %134 : vector<16xf32> to vector<16x1xf32>
    %cst_54 = arith.constant 3.200000e+01 : f32
    %136 = vector.broadcast %cst_54 : f32 to vector<16x1xf32>
    %137 = arith.divf %135, %136 : vector<16x1xf32>
    %138 = vector.broadcast %130 : vector<16x1xf32> to vector<16x32xf32>
    %139 = arith.subf %124, %138 : vector<16x32xf32>
    %cst_55 = arith.constant 9.99999974E-6 : f32
    %140 = vector.broadcast %cst_55 : f32 to vector<16x1xf32>
    %141 = arith.addf %137, %140 : vector<16x1xf32>
    %142 = math.rsqrt %141 : vector<16x1xf32>
    %143 = vector.broadcast %142 : vector<16x1xf32> to vector<16x32xf32>
    %144 = arith.mulf %139, %143 : vector<16x32xf32>
    %145 = vector.broadcast %125 : vector<1x32xf32> to vector<16x32xf32>
    %146 = arith.mulf %144, %145 : vector<16x32xf32>
    %147 = vector.broadcast %126 : vector<1x32xf32> to vector<16x32xf32>
    %148 = arith.addf %146, %147 : vector<16x32xf32>
    %149 = vector.broadcast %2 : vector<16x1xf32> to vector<16x32xf32>
    %150 = arith.mulf %148, %149 : vector<16x32xf32>
    %c1 = arith.constant 1 : index
    %c0_56 = arith.constant 0 : index
    %c0_57 = arith.constant 0 : index
    %151 = vector.load %arg8[%c1, %c0_56, %c0_57] : memref<2x6x32xf32, #tpu.memory_space<vmem>>, vector<1x6x32xf32>
    %152 = vector.shape_cast %151 : vector<1x6x32xf32> to vector<6x32xf32>
    %c1_58 = arith.constant 1 : index
    %c0_59 = arith.constant 0 : index
    %c0_60 = arith.constant 0 : index
    %153 = vector.load %arg5[%c1_58, %c0_59, %c0_60] : memref<2x32x96xbf16, #tpu.memory_space<vmem>>, vector<1x32x96xbf16>
    %154 = vector.shape_cast %153 : vector<1x32x96xbf16> to vector<32x96xbf16>
    %155 = arith.truncf %150 : vector<16x32xf32> to vector<16x32xbf16>
    %cst_61 = arith.constant dense<0.000000e+00> : vector<16x96xf32>
    %156 = tpu.matmul %155, %154, %cst_61 {dimension_numbers = #tpu.dot_dimension_numbers<[1], [0], [0], [1], [0, 0, 1, 1], [], []>} : vector<16x32xbf16>, vector<32x96xbf16>, vector<16x96xf32> -> vector<16x96xf32>
    %c1_62 = arith.constant 1 : index
    %c0_63 = arith.constant 0 : index
    %c0_64 = arith.constant 0 : index
    %157 = vector.load %arg6[%c1_62, %c0_63, %c0_64] : memref<2x1x96xf32, #tpu.memory_space<vmem>>, vector<1x1x96xf32>
    %158 = vector.shape_cast %157 : vector<1x1x96xf32> to vector<1x96xf32>
    %159 = vector.broadcast %158 : vector<1x96xf32> to vector<16x96xf32>
    %160 = arith.addf %156, %159 : vector<16x96xf32>
    %161 = vector.shape_cast %160 : vector<16x96xf32> to vector<2x8x96xf32>
    %162 = arith.truncf %161 : vector<2x8x96xf32> to vector<2x8x96xbf16>
    %163 = vector.extract_strided_slice %162 {offsets = [0, 0, 0], sizes = [2, 8, 16], strides = [1, 1, 1]} : vector<2x8x96xbf16> to vector<2x8x16xbf16>
    %164 = vector.extract_strided_slice %162 {offsets = [0, 0, 32], sizes = [2, 8, 16], strides = [1, 1, 1]} : vector<2x8x96xbf16> to vector<2x8x16xbf16>
    %165 = vector.extract_strided_slice %162 {offsets = [0, 0, 64], sizes = [2, 8, 16], strides = [1, 1, 1]} : vector<2x8x96xbf16> to vector<2x8x16xbf16>
    "tpu.trace_start"() <{level = 10 : i32, message = "bqd,bkd->bqk"}> : () -> ()
    %cst_65 = arith.constant dense<0.000000e+00> : vector<2x8x8xf32>
    %166 = tpu.matmul %163, %164, %cst_65 {dimension_numbers = #tpu.dot_dimension_numbers<[2], [2], [1], [1], [0, 0, 0, 1, 1, 1], [0], [0]>} : vector<2x8x16xbf16>, vector<2x8x16xbf16>, vector<2x8x8xf32> -> vector<2x8x8xf32>
    "tpu.trace_stop"() : () -> ()
    %cst_66 = arith.constant 2.500000e-01 : f32
    %167 = vector.broadcast %cst_66 : f32 to vector<2x8x8xf32>
    %168 = arith.mulf %166, %167 : vector<2x8x8xf32>
    %169 = vector.broadcast %1 : vector<2x1x8xf32> to vector<2x8x8xf32>
    %170 = arith.addf %168, %169 : vector<2x8x8xf32>
    %cst_67 = arith.constant dense<0xFF800000> : vector<2x8xf32>
    %171 = vector.multi_reduction <maximumf>, %170, %cst_67 [2] : vector<2x8x8xf32> to vector<2x8xf32>
    %172 = vector.shape_cast %171 : vector<2x8xf32> to vector<2x8x1xf32>
    %173 = vector.broadcast %172 : vector<2x8x1xf32> to vector<2x8x8xf32>
    %174 = arith.subf %170, %173 : vector<2x8x8xf32>
    %175 = math.exp %174 : vector<2x8x8xf32>
    %cst_68 = arith.constant dense<0.000000e+00> : vector<2x8xf32>
    %176 = vector.multi_reduction <add>, %175, %cst_68 [2] : vector<2x8x8xf32> to vector<2x8xf32>
    %177 = vector.shape_cast %176 : vector<2x8xf32> to vector<2x8x1xf32>
    %178 = tpu.reciprocal %177 {approx = true} : vector<2x8x1xf32> -> vector<2x8x1xf32>
    %179 = vector.broadcast %178 : vector<2x8x1xf32> to vector<2x8x8xf32>
    %180 = arith.mulf %175, %179 : vector<2x8x8xf32>
    %181 = arith.truncf %180 : vector<2x8x8xf32> to vector<2x8x8xbf16>
    "tpu.trace_start"() <{level = 10 : i32, message = "bqk,bkd->bqd"}> : () -> ()
    %cst_69 = arith.constant dense<0.000000e+00> : vector<2x8x16xf32>
    %182 = tpu.matmul %181, %165, %cst_69 {dimension_numbers = #tpu.dot_dimension_numbers<[2], [1], [1], [2], [0, 0, 0, 1, 1, 2], [0], [0]>} : vector<2x8x8xbf16>, vector<2x8x16xbf16>, vector<2x8x16xf32> -> vector<2x8x16xf32>
    "tpu.trace_stop"() : () -> ()
    %183 = vector.extract_strided_slice %162 {offsets = [0, 0, 16], sizes = [2, 8, 16], strides = [1, 1, 1]} : vector<2x8x96xbf16> to vector<2x8x16xbf16>
    %184 = vector.extract_strided_slice %162 {offsets = [0, 0, 48], sizes = [2, 8, 16], strides = [1, 1, 1]} : vector<2x8x96xbf16> to vector<2x8x16xbf16>
    %185 = vector.extract_strided_slice %162 {offsets = [0, 0, 80], sizes = [2, 8, 16], strides = [1, 1, 1]} : vector<2x8x96xbf16> to vector<2x8x16xbf16>
    "tpu.trace_start"() <{level = 10 : i32, message = "bqd,bkd->bqk"}> : () -> ()
    %cst_70 = arith.constant dense<0.000000e+00> : vector<2x8x8xf32>
    %186 = tpu.matmul %183, %184, %cst_70 {dimension_numbers = #tpu.dot_dimension_numbers<[2], [2], [1], [1], [0, 0, 0, 1, 1, 1], [0], [0]>} : vector<2x8x16xbf16>, vector<2x8x16xbf16>, vector<2x8x8xf32> -> vector<2x8x8xf32>
    "tpu.trace_stop"() : () -> ()
    %cst_71 = arith.constant 2.500000e-01 : f32
    %187 = vector.broadcast %cst_71 : f32 to vector<2x8x8xf32>
    %188 = arith.mulf %186, %187 : vector<2x8x8xf32>
    %189 = vector.broadcast %1 : vector<2x1x8xf32> to vector<2x8x8xf32>
    %190 = arith.addf %188, %189 : vector<2x8x8xf32>
    %cst_72 = arith.constant dense<0xFF800000> : vector<2x8xf32>
    %191 = vector.multi_reduction <maximumf>, %190, %cst_72 [2] : vector<2x8x8xf32> to vector<2x8xf32>
    %192 = vector.shape_cast %191 : vector<2x8xf32> to vector<2x8x1xf32>
    %193 = vector.broadcast %192 : vector<2x8x1xf32> to vector<2x8x8xf32>
    %194 = arith.subf %190, %193 : vector<2x8x8xf32>
    %195 = math.exp %194 : vector<2x8x8xf32>
    %cst_73 = arith.constant dense<0.000000e+00> : vector<2x8xf32>
    %196 = vector.multi_reduction <add>, %195, %cst_73 [2] : vector<2x8x8xf32> to vector<2x8xf32>
    %197 = vector.shape_cast %196 : vector<2x8xf32> to vector<2x8x1xf32>
    %198 = tpu.reciprocal %197 {approx = true} : vector<2x8x1xf32> -> vector<2x8x1xf32>
    %199 = vector.broadcast %198 : vector<2x8x1xf32> to vector<2x8x8xf32>
    %200 = arith.mulf %195, %199 : vector<2x8x8xf32>
    %201 = arith.truncf %200 : vector<2x8x8xf32> to vector<2x8x8xbf16>
    "tpu.trace_start"() <{level = 10 : i32, message = "bqk,bkd->bqd"}> : () -> ()
    %cst_74 = arith.constant dense<0.000000e+00> : vector<2x8x16xf32>
    %202 = tpu.matmul %201, %185, %cst_74 {dimension_numbers = #tpu.dot_dimension_numbers<[2], [1], [1], [2], [0, 0, 0, 1, 1, 2], [0], [0]>} : vector<2x8x8xbf16>, vector<2x8x16xbf16>, vector<2x8x16xf32> -> vector<2x8x16xf32>
    "tpu.trace_stop"() : () -> ()
    %203 = tpu.concatenate %182, %202 in 2 : vector<2x8x16xf32>, vector<2x8x16xf32> -> vector<2x8x32xf32>
    %204 = vector.shape_cast %203 : vector<2x8x32xf32> to vector<16x32xf32>
    %c1_75 = arith.constant 1 : index
    %c0_76 = arith.constant 0 : index
    %c0_77 = arith.constant 0 : index
    %205 = vector.load %arg7[%c1_75, %c0_76, %c0_77] : memref<2x32x32xbf16, #tpu.memory_space<vmem>>, vector<1x32x32xbf16>
    %206 = vector.shape_cast %205 : vector<1x32x32xbf16> to vector<32x32xbf16>
    %207 = arith.truncf %204 : vector<16x32xf32> to vector<16x32xbf16>
    %cst_78 = arith.constant dense<0.000000e+00> : vector<16x32xf32>
    %208 = tpu.matmul %207, %206, %cst_78 {dimension_numbers = #tpu.dot_dimension_numbers<[1], [0], [0], [1], [0, 0, 1, 1], [], []>} : vector<16x32xbf16>, vector<32x32xbf16>, vector<16x32xf32> -> vector<16x32xf32>
    %209 = vector.extract_strided_slice %152 {offsets = [0, 0], sizes = [1, 32], strides = [1, 1]} : vector<6x32xf32> to vector<1x32xf32>
    %210 = vector.broadcast %209 : vector<1x32xf32> to vector<16x32xf32>
    %211 = arith.addf %208, %210 : vector<16x32xf32>
    %212 = arith.addf %150, %211 : vector<16x32xf32>
    %213 = vector.extract_strided_slice %152 {offsets = [1, 0], sizes = [1, 32], strides = [1, 1]} : vector<6x32xf32> to vector<1x32xf32>
    %214 = vector.extract_strided_slice %152 {offsets = [2, 0], sizes = [1, 32], strides = [1, 1]} : vector<6x32xf32> to vector<1x32xf32>
    %cst_79 = arith.constant dense<0.000000e+00> : vector<16xf32>
    %215 = vector.multi_reduction <add>, %212, %cst_79 [1] : vector<16x32xf32> to vector<16xf32>
    %216 = vector.shape_cast %215 : vector<16xf32> to vector<16x1xf32>
    %cst_80 = arith.constant 3.200000e+01 : f32
    %217 = vector.broadcast %cst_80 : f32 to vector<16x1xf32>
    %218 = arith.divf %216, %217 : vector<16x1xf32>
    %219 = vector.broadcast %218 : vector<16x1xf32> to vector<16x32xf32>
    %220 = arith.subf %212, %219 : vector<16x32xf32>
    %221 = arith.mulf %220, %220 : vector<16x32xf32>
    %cst_81 = arith.constant dense<0.000000e+00> : vector<16xf32>
    %222 = vector.multi_reduction <add>, %221, %cst_81 [1] : vector<16x32xf32> to vector<16xf32>
    %223 = vector.shape_cast %222 : vector<16xf32> to vector<16x1xf32>
    %cst_82 = arith.constant 3.200000e+01 : f32
    %224 = vector.broadcast %cst_82 : f32 to vector<16x1xf32>
    %225 = arith.divf %223, %224 : vector<16x1xf32>
    %226 = vector.broadcast %218 : vector<16x1xf32> to vector<16x32xf32>
    %227 = arith.subf %212, %226 : vector<16x32xf32>
    %cst_83 = arith.constant 9.99999974E-6 : f32
    %228 = vector.broadcast %cst_83 : f32 to vector<16x1xf32>
    %229 = arith.addf %225, %228 : vector<16x1xf32>
    %230 = math.rsqrt %229 : vector<16x1xf32>
    %231 = vector.broadcast %230 : vector<16x1xf32> to vector<16x32xf32>
    %232 = arith.mulf %227, %231 : vector<16x32xf32>
    %233 = vector.broadcast %213 : vector<1x32xf32> to vector<16x32xf32>
    %234 = arith.mulf %232, %233 : vector<16x32xf32>
    %235 = vector.broadcast %214 : vector<1x32xf32> to vector<16x32xf32>
    %236 = arith.addf %234, %235 : vector<16x32xf32>
    %237 = vector.broadcast %2 : vector<16x1xf32> to vector<16x32xf32>
    %238 = arith.mulf %236, %237 : vector<16x32xf32>
    %c1_84 = arith.constant 1 : index
    %c0_85 = arith.constant 0 : index
    %c0_86 = arith.constant 0 : index
    %239 = vector.load %arg9[%c1_84, %c0_85, %c0_86] : memref<2x96x64xbf16, #tpu.memory_space<vmem>>, vector<1x96x64xbf16>
    %240 = vector.shape_cast %239 : vector<1x96x64xbf16> to vector<96x64xbf16>
    %c1_87 = arith.constant 1 : index
    %c0_88 = arith.constant 0 : index
    %c0_89 = arith.constant 0 : index
    %241 = vector.load %arg10[%c1_87, %c0_88, %c0_89] : memref<2x1x64xf32, #tpu.memory_space<vmem>>, vector<1x1x64xf32>
    %242 = vector.shape_cast %241 : vector<1x1x64xf32> to vector<1x64xf32>
    %c1_i32_90 = arith.constant 1 : i32
    %243 = vector.broadcast %c1_i32_90 : i32 to vector<16x1xi32>
    %244 = arith.cmpi sge, %3, %243 : vector<16x1xi32>
    %c1_i32_91 = arith.constant 1 : i32
    %245 = tpu.dynamic_rotate %238 by %c1_i32_91 dim 0 : vector<16x32xf32>, i32 -> vector<16x32xf32>
    %cst_92 = arith.constant 0.000000e+00 : f32
    %246 = vector.shape_cast %244 : vector<16x1xi1> to vector<16x1xi1>
    %247 = vector.broadcast %246 : vector<16x1xi1> to vector<16x32xi1>
    %248 = vector.broadcast %cst_92 : f32 to vector<16x32xf32>
    %249 = arith.select %247, %245, %248 : vector<16x32xi1>, vector<16x32xf32>
    %c7_i32_93 = arith.constant 7 : i32
    %250 = vector.broadcast %c7_i32_93 : i32 to vector<16x1xi32>
    %251 = arith.cmpi slt, %3, %250 : vector<16x1xi32>
    %c15_i32_94 = arith.constant 15 : i32
    %252 = tpu.dynamic_rotate %238 by %c15_i32_94 dim 0 : vector<16x32xf32>, i32 -> vector<16x32xf32>
    %cst_95 = arith.constant 0.000000e+00 : f32
    %253 = vector.shape_cast %251 : vector<16x1xi1> to vector<16x1xi1>
    %254 = vector.broadcast %253 : vector<16x1xi1> to vector<16x32xi1>
    %255 = vector.broadcast %cst_95 : f32 to vector<16x32xf32>
    %256 = arith.select %254, %252, %255 : vector<16x32xi1>, vector<16x32xf32>
    %257 = tpu.concatenate %249, %238, %256 in 1 : vector<16x32xf32>, vector<16x32xf32>, vector<16x32xf32> -> vector<16x96xf32>
    %258 = arith.truncf %257 : vector<16x96xf32> to vector<16x96xbf16>
    %cst_96 = arith.constant dense<0.000000e+00> : vector<16x64xf32>
    %259 = tpu.matmul %258, %240, %cst_96 {dimension_numbers = #tpu.dot_dimension_numbers<[1], [0], [0], [1], [0, 0, 1, 1], [], []>} : vector<16x96xbf16>, vector<96x64xbf16>, vector<16x64xf32> -> vector<16x64xf32>
    %260 = vector.broadcast %242 : vector<1x64xf32> to vector<16x64xf32>
    %261 = arith.addf %259, %260 : vector<16x64xf32>
    %cst_97 = arith.constant 0.000000e+00 : f32
    %262 = vector.broadcast %cst_97 : f32 to vector<16x64xf32>
    %263 = arith.maximumf %261, %262 : vector<16x64xf32>
    %c1_98 = arith.constant 1 : index
    %c0_99 = arith.constant 0 : index
    %c0_100 = arith.constant 0 : index
    %264 = vector.load %arg11[%c1_98, %c0_99, %c0_100] : memref<2x64x32xbf16, #tpu.memory_space<vmem>>, vector<1x64x32xbf16>
    %265 = vector.shape_cast %264 : vector<1x64x32xbf16> to vector<64x32xbf16>
    %266 = arith.truncf %263 : vector<16x64xf32> to vector<16x64xbf16>
    %cst_101 = arith.constant dense<0.000000e+00> : vector<16x32xf32>
    %267 = tpu.matmul %266, %265, %cst_101 {dimension_numbers = #tpu.dot_dimension_numbers<[1], [0], [0], [1], [0, 0, 1, 1], [], []>} : vector<16x64xbf16>, vector<64x32xbf16>, vector<16x32xf32> -> vector<16x32xf32>
    %268 = vector.extract_strided_slice %152 {offsets = [3, 0], sizes = [1, 32], strides = [1, 1]} : vector<6x32xf32> to vector<1x32xf32>
    %269 = vector.broadcast %268 : vector<1x32xf32> to vector<16x32xf32>
    %270 = arith.addf %267, %269 : vector<16x32xf32>
    %271 = arith.addf %238, %270 : vector<16x32xf32>
    %272 = vector.extract_strided_slice %152 {offsets = [4, 0], sizes = [1, 32], strides = [1, 1]} : vector<6x32xf32> to vector<1x32xf32>
    %273 = vector.extract_strided_slice %152 {offsets = [5, 0], sizes = [1, 32], strides = [1, 1]} : vector<6x32xf32> to vector<1x32xf32>
    %cst_102 = arith.constant dense<0.000000e+00> : vector<16xf32>
    %274 = vector.multi_reduction <add>, %271, %cst_102 [1] : vector<16x32xf32> to vector<16xf32>
    %275 = vector.shape_cast %274 : vector<16xf32> to vector<16x1xf32>
    %cst_103 = arith.constant 3.200000e+01 : f32
    %276 = vector.broadcast %cst_103 : f32 to vector<16x1xf32>
    %277 = arith.divf %275, %276 : vector<16x1xf32>
    %278 = vector.broadcast %277 : vector<16x1xf32> to vector<16x32xf32>
    %279 = arith.subf %271, %278 : vector<16x32xf32>
    %280 = arith.mulf %279, %279 : vector<16x32xf32>
    %cst_104 = arith.constant dense<0.000000e+00> : vector<16xf32>
    %281 = vector.multi_reduction <add>, %280, %cst_104 [1] : vector<16x32xf32> to vector<16xf32>
    %282 = vector.shape_cast %281 : vector<16xf32> to vector<16x1xf32>
    %cst_105 = arith.constant 3.200000e+01 : f32
    %283 = vector.broadcast %cst_105 : f32 to vector<16x1xf32>
    %284 = arith.divf %282, %283 : vector<16x1xf32>
    %285 = vector.broadcast %277 : vector<16x1xf32> to vector<16x32xf32>
    %286 = arith.subf %271, %285 : vector<16x32xf32>
    %cst_106 = arith.constant 9.99999974E-6 : f32
    %287 = vector.broadcast %cst_106 : f32 to vector<16x1xf32>
    %288 = arith.addf %284, %287 : vector<16x1xf32>
    %289 = math.rsqrt %288 : vector<16x1xf32>
    %290 = vector.broadcast %289 : vector<16x1xf32> to vector<16x32xf32>
    %291 = arith.mulf %286, %290 : vector<16x32xf32>
    %292 = vector.broadcast %272 : vector<1x32xf32> to vector<16x32xf32>
    %293 = arith.mulf %291, %292 : vector<16x32xf32>
    %294 = vector.broadcast %273 : vector<1x32xf32> to vector<16x32xf32>
    %295 = arith.addf %293, %294 : vector<16x32xf32>
    %296 = vector.broadcast %2 : vector<16x1xf32> to vector<16x32xf32>
    %297 = arith.mulf %295, %296 : vector<16x32xf32>
    %c0_107 = arith.constant 0 : index
    %c0_108 = arith.constant 0 : index
    %298 = vector.load %arg12[%c0_107, %c0_108] : memref<16x32xf32, #tpu.memory_space<vmem>>, vector<16x32xf32>
    tpu.vector_store %arg12[%c0_107, %c0_108], %297 {strides = array<i32>} : memref<16x32xf32, #tpu.memory_space<vmem>>, vector<16x32xf32>,
    return
  }
  func.func @transform_0(%arg0: i32) -> (i32, i32) {
    %c0_i32 = arith.constant 0 : i32
    %c0_i32_0 = arith.constant 0 : i32
    %c0_i32_1 = arith.constant 0 : i32
    return %c0_i32, %c0_i32_0 : i32, i32
  }
  func.func @transform_1(%arg0: i32) -> (i32, i32, i32) {
    %c0_i32 = arith.constant 0 : i32
    %c0_i32_0 = arith.constant 0 : i32
    %c0_i32_1 = arith.constant 0 : i32
    %c0_i32_2 = arith.constant 0 : i32
    return %c0_i32, %c0_i32_0, %c0_i32_1 : i32, i32, i32
  }
  func.func @transform_2(%arg0: i32) -> (i32, i32) {
    %c0_i32 = arith.constant 0 : i32
    %c0_i32_0 = arith.constant 0 : i32
    %c0_i32_1 = arith.constant 0 : i32
    return %c0_i32, %c0_i32_0 : i32, i32
  }
  func.func @transform_3(%arg0: i32) -> (i32, i32) {
    %c0_i32 = arith.constant 0 : i32
    %c0_i32_0 = arith.constant 0 : i32
    %c0_i32_1 = arith.constant 0 : i32
    return %c0_i32, %c0_i32_0 : i32, i32
  }
  func.func @transform_4(%arg0: i32) -> (i32, i32, i32) {
    %c0_i32 = arith.constant 0 : i32
    %c0_i32_0 = arith.constant 0 : i32
    %c0_i32_1 = arith.constant 0 : i32
    %c0_i32_2 = arith.constant 0 : i32
    return %c0_i32, %c0_i32_0, %c0_i32_1 : i32, i32, i32
  }
  func.func @transform_5(%arg0: i32) -> (i32, i32, i32) {
    %c0_i32 = arith.constant 0 : i32
    %c0_i32_0 = arith.constant 0 : i32
    %c0_i32_1 = arith.constant 0 : i32
    %c0_i32_2 = arith.constant 0 : i32
    return %c0_i32, %c0_i32_0, %c0_i32_1 : i32, i32, i32
  }
  func.func @transform_6(%arg0: i32) -> (i32, i32, i32) {
    %c0_i32 = arith.constant 0 : i32
    %c0_i32_0 = arith.constant 0 : i32
    %c0_i32_1 = arith.constant 0 : i32
    %c0_i32_2 = arith.constant 0 : i32
    return %c0_i32, %c0_i32_0, %c0_i32_1 : i32, i32, i32
  }
  func.func @transform_7(%arg0: i32) -> (i32, i32, i32) {
    %c0_i32 = arith.constant 0 : i32
    %c0_i32_0 = arith.constant 0 : i32
    %c0_i32_1 = arith.constant 0 : i32
    %c0_i32_2 = arith.constant 0 : i32
    return %c0_i32, %c0_i32_0, %c0_i32_1 : i32, i32, i32
  }
  func.func @transform_8(%arg0: i32) -> (i32, i32, i32) {
    %c0_i32 = arith.constant 0 : i32
    %c0_i32_0 = arith.constant 0 : i32
    %c0_i32_1 = arith.constant 0 : i32
    %c0_i32_2 = arith.constant 0 : i32
    return %c0_i32, %c0_i32_0, %c0_i32_1 : i32, i32, i32
  }
  func.func @transform_9(%arg0: i32) -> (i32, i32, i32) {
    %c0_i32 = arith.constant 0 : i32
    %c0_i32_0 = arith.constant 0 : i32
    %c0_i32_1 = arith.constant 0 : i32
    %c0_i32_2 = arith.constant 0 : i32
    return %c0_i32, %c0_i32_0, %c0_i32_1 : i32, i32, i32
  }
  func.func @transform_10(%arg0: i32) -> (i32, i32, i32) {
    %c0_i32 = arith.constant 0 : i32
    %c0_i32_0 = arith.constant 0 : i32
    %c0_i32_1 = arith.constant 0 : i32
    %c0_i32_2 = arith.constant 0 : i32
    return %c0_i32, %c0_i32_0, %c0_i32_1 : i32, i32, i32
  }
  func.func @transform_11(%arg0: i32) -> (i32, i32) {
    %c0_i32 = arith.constant 0 : i32
    %c0_i32_0 = arith.constant 0 : i32
    %c0_i32_1 = arith.constant 0 : i32
    return %c0_i32, %c0_i32_0 : i32, i32
  }
}

</mosaic_0001>

<llo_original>
// kernel: tpu_custom_call.1
$region0: #{tpu_custom_call.1}
  #allocation0 [shape = 'u32[]', space=smem, size = 0x4, offset = 0x4, fixed_abs, tag = 'smem constant byte address 0x4 - core index']
  #allocation1 [shape = 'u32[72,128]{1,0:T(1,128)}', space=vmem, size = 0x9000, scoped, tag = 'internal scratch']
  %s0 = inlined_call_operand.vmem [shape: f32[16,32], index: 0, kind: input, shape index: {}]
  %s1 = inlined_call_operand.vmem [shape: f32[2,1,8], index: 1, kind: input, shape index: {}]
  %s2 = inlined_call_operand.vmem [shape: f32[16,1], index: 2, kind: input, shape index: {}]
  %s3 = inlined_call_operand.vmem [shape: s32[16,1], index: 3, kind: input, shape index: {}]
  %s4 = inlined_call_operand.vmem [shape: bf16[2,32,96], index: 4, kind: input, shape index: {}]
  %s5 = inlined_call_operand.vmem [shape: f32[2,1,96], index: 5, kind: input, shape index: {}]
  %s6 = inlined_call_operand.vmem [shape: bf16[2,32,32], index: 6, kind: input, shape index: {}]
  %s7 = inlined_call_operand.vmem [shape: f32[2,6,32], index: 7, kind: input, shape index: {}]
  %s8 = inlined_call_operand.vmem [shape: bf16[2,96,64], index: 8, kind: input, shape index: {}]
  %s9 = inlined_call_operand.vmem [shape: f32[2,1,64], index: 9, kind: input, shape index: {}]
  %s10 = inlined_call_operand.vmem [shape: bf16[2,64,32], index: 10, kind: input, shape index: {}]
  %s11 = inlined_call_operand.hbm [shape: f32[16,32], index: 11, kind: output, shape index: {}]
  %s12 = sld [smem:[#allocation0]]
  $region54: #{tpu_custom_call.1} parent=0
    _
  %s14 = ssub.s32 1, %s12
  %s15 = scalar_select 0, %s14, %s12
  $region1: #{tpu_custom_call.1} parent=0
    #allocation2 [shape = 'u8[8192]{0}', space=vmem, size = 0x2000, scoped, tag = 'output window, operand 0, single buffered']
    #allocation3 [shape = 's32[1]{0}', space=sflag, size = 0x4, scoped, tag = 'scoped memory for tpu_custom_call.1']
    %16 = vsyncpa [#allocation3], 0
    // Predicated region
    $region2: #{tpu_custom_call.1} parent=1 // pred_check
      _
    $region3: #{tpu_custom_call.1} parent=1 // pred_check_branch
      %18 = sbr.rel (0) target = $region5
    $region4: #{tpu_custom_call.1} parent=1 // pred_region
      _
    $region5: #{tpu_custom_call.1} parent=1 // pred_fallthru
      _
    // Predicated region
    $region6: #{tpu_custom_call.1} parent=1 // pred_check
      _
    $region7: #{tpu_custom_call.1} parent=1 // pred_check_branch
      %20 = sbr.rel (0) target = $region9
    $region8: #{tpu_custom_call.1} parent=1 // pred_region
      _
    $region9: #{tpu_custom_call.1} parent=1 // pred_fallthru
      _
    // Predicated region
    $region10: #{tpu_custom_call.1} parent=1 // pred_check
      _
    $region11: #{tpu_custom_call.1} parent=1 // pred_check_branch
      %22 = sbr.rel (0) target = $region13
    $region12: #{tpu_custom_call.1} parent=1 // pred_region
      _
    $region13: #{tpu_custom_call.1} parent=1 // pred_fallthru
      _
    // Predicated region
    $region14: #{tpu_custom_call.1} parent=1 // pred_check
      _
    $region15: #{tpu_custom_call.1} parent=1 // pred_check_branch
      %24 = sbr.rel (0) target = $region17
    $region16: #{tpu_custom_call.1} parent=1 // pred_region
      _
    $region17: #{tpu_custom_call.1} parent=1 // pred_fallthru
      _
    // Predicated region
    $region18: #{tpu_custom_call.1} parent=1 // pred_check
      _
    $region19: #{tpu_custom_call.1} parent=1 // pred_check_branch
      %26 = sbr.rel (0) target = $region21
    $region20: #{tpu_custom_call.1} parent=1 // pred_region
      _
    $region21: #{tpu_custom_call.1} parent=1 // pred_fallthru
      _
    // Predicated region
    $region22: #{tpu_custom_call.1} parent=1 // pred_check
      _
    $region23: #{tpu_custom_call.1} parent=1 // pred_check_branch
      %28 = sbr.rel (0) target = $region25
    $region24: #{tpu_custom_call.1} parent=1 // pred_region
      _
    $region25: #{tpu_custom_call.1} parent=1 // pred_fallthru
      _
    // Predicated region
    $region26: #{tpu_custom_call.1} parent=1 // pred_check
      _
    $region27: #{tpu_custom_call.1} parent=1 // pred_check_branch
      %30 = sbr.rel (0) target = $region29
    $region28: #{tpu_custom_call.1} parent=1 // pred_region
      _
    $region29: #{tpu_custom_call.1} parent=1 // pred_fallthru
      _
    // Predicated region
    $region30: #{tpu_custom_call.1} parent=1 // pred_check
      _
    $region31: #{tpu_custom_call.1} parent=1 // pred_check_branch
      %32 = sbr.rel (0) target = $region33
    $region32: #{tpu_custom_call.1} parent=1 // pred_region
      _
    $region33: #{tpu_custom_call.1} parent=1 // pred_fallthru
      _
    // Predicated region
    $region34: #{tpu_custom_call.1} parent=1 // pred_check
      _
    $region35: #{tpu_custom_call.1} parent=1 // pred_check_branch
      %34 = sbr.rel (0) target = $region37
    $region36: #{tpu_custom_call.1} parent=1 // pred_region
      _
    $region37: #{tpu_custom_call.1} parent=1 // pred_fallthru
      _
    // Predicated region
    $region38: #{tpu_custom_call.1} parent=1 // pred_check
      _
    $region39: #{tpu_custom_call.1} parent=1 // pred_check_branch
      %36 = sbr.rel (0) target = $region41
    $region40: #{tpu_custom_call.1} parent=1 // pred_region
      _
    $region41: #{tpu_custom_call.1} parent=1 // pred_fallthru
      _
    // Predicated region
    $region42: #{tpu_custom_call.1} parent=1 // pred_check
      _
    $region43: #{tpu_custom_call.1} parent=1 // pred_check_branch
      %38 = sbr.rel (0) target = $region45
    $region44: #{tpu_custom_call.1} parent=1 // pred_region
      _
    $region45: #{tpu_custom_call.1} parent=1 // pred_fallthru
      _
    %v40 = vld [vmem:[%s0] sm:$0xff]
    %v41 = vld [vmem:[%s0 + $0x8] sm:$0xff]
    %v42 = vld [vmem:[%s1] sm:$0x1]
    %v43 = vld [vmem:[%s1 + $0x1] sm:$0x1]
    %v44 = vld [vmem:[%s2] sm:$0xff]
    %v45 = vld [vmem:[%s2 + $0x8] sm:$0xff]
    %v46 = vld [vmem:[%s3] sm:$0xff]
    %v47 = vld [vmem:[%s3 + $0x8] sm:$0xff]
    %v48 = vld [vmem:[%s7] sm:$0x3f]
    %v49 = vld [vmem:[%s4] sm:$0xf]
    %v50 = vld [vmem:[%s4 + $0x4] sm:$0xf]
    %v51 = vld [vmem:[%s4 + $0x8] sm:$0xf]
    %v52 = vld [vmem:[%s4 + $0xc] sm:$0xf]
    %v53 = vpack.c.bf16 %v41, %v40
    %v54 = vld [vmem:[%s5] sm:$0x1]
    %v56 = vperm.slane %v54, 0
    %v62 = vunpack.c.l.b16 %v49
    %v63 = vunpack.c.l.b16 %v50
    %v64 = vunpack.c.l.b16 %v51
    %v65 = vunpack.c.l.b16 %v52
    %v66 = vpack.c.b16 %v63, %v62
    %v67 = vpack.c.b16 %v65, %v64
    %vm70 = vcmask 261120
    %v72 = vsel %vm70, %v53, 0
    %74 = vmatpush.bf16.msra.mxu0 0
    %75 = vmatpush.bf16.msra.mxu0 0
    %76 = vmatpush.bf16.msra.mxu0 0
    %77 = vmatpush.bf16.msra.mxu0 0
    %78 = vmatpush.bf16.msra.mxu0 0
    %79 = vmatpush.bf16.msra.mxu0 0
    %80 = vmatpush.bf16.msra.mxu0 %v67
    %81 = vmatpush.bf16.msra.mxu0 %v66
    %82 = vmatmul.bf16.gmra.mxu0 %v72
    %v83 = vpop.f32.mrf.mxu0
    %v84 = vadd.f32 %v56, %v83
    %v85 = vpop.f32.mrf.mxu0
    %v86 = vadd.f32 %v56, %v85
    %87 = vdwg.mxu0
    %v88 = vpack.c.bf16 %v84, %v84
    %v89 = vpack.c.bf16 %v86, %v86
    %v91 = vunpack.c.l.b16 %v88
    %v92 = vpack.c.b16 %v91, %v91
    %93 = vrot.lane.b32.xlu0 %v92, 96
    %v94 = vpop.permute.xlu0 %93
    %vm95 = vcmask 130048
    %v97 = vsel %vm95, %v88, 0
    %v100 = vsel %vm95, %v94, 0
    %102 = vmatpush.bf16.xpose.msra.mxu0 0
    %103 = vmatpush.bf16.xpose.msra.mxu0 0
    %104 = vmatpush.bf16.xpose.msra.mxu0 0
    %105 = vmatpush.bf16.xpose.msra.mxu0 0
    %106 = vmatpush.bf16.xpose.msra.mxu0 0
    %107 = vmatpush.bf16.xpose.msra.mxu0 0
    %108 = vmatpush.bf16.xpose.msra.mxu0 0
    %109 = vmatpush.bf16.xpose.msra.mxu0 %v100
    %110 = vmatmul.bf16.gmra.mxu0 %v97
    %v111 = vpop.f32.mrf.mxu0
    %v112 = vadd.f32 0.0, %v111
    %v113 = vpop.f32.mrf.mxu0
    %114 = vdwg.mxu0
    %v116 = vunpack.c.l.b16 %v89
    %v117 = vpack.c.b16 %v116, %v116
    %118 = vrot.lane.b32.xlu0 %v117, 96
    %v119 = vpop.permute.xlu0 %118
    %v121 = vsel %vm95, %v89, 0
    %v124 = vsel %vm95, %v119, 0
    %126 = vmatpush.bf16.xpose.msra.mxu0 0
    %127 = vmatpush.bf16.xpose.msra.mxu0 0
    %128 = vmatpush.bf16.xpose.msra.mxu0 0
    %129 = vmatpush.bf16.xpose.msra.mxu0 0
    %130 = vmatpush.bf16.xpose.msra.mxu0 0
    %131 = vmatpush.bf16.xpose.msra.mxu0 0
    %132 = vmatpush.bf16.xpose.msra.mxu0 0
    %133 = vmatpush.bf16.xpose.msra.mxu0 %v124
    %134 = vmatmul.bf16.gmra.mxu0 %v121
    %v135 = vpop.f32.mrf.mxu0
    %v136 = vadd.f32 0.0, %v135
    %v137 = vpop.f32.mrf.mxu0
    %138 = vdwg.mxu0
    %v139 = vmul.f32 %v112, 0.25
    %v140 = vmul.f32 %v136, 0.25
    %v143 = vperm.slane %v42, 0
    %v144 = vperm.slane %v43, 0
    %v147 = vadd.f32 %v139, %v143
    %v148 = vadd.f32 %v140, %v144
    %vm149 = vcmask 64512
    %v150 = vsel %vm149, %v147, -inf
    %151 = vmax.xlane.f32.xlu0 %v150
    %v152 = vpop.xlane.xlu0 %151
    %v153 = vsel %vm149, %v148, -inf
    %154 = vmax.xlane.f32.xlu0 %v153
    %v155 = vpop.xlane.xlu0 %154
    %v156 = vsub.f32 %v147, %v152
    %v157 = vsub.f32 %v148, %v155
    %v158 = vmul.f32 %v156, 1.442695
    %v159 = vpow.pop %v158
    %v160 = vmul.f32 %v157, 1.442695
    %v161 = vpow.pop %v160
    %v162 = vsel %vm149, %v159, 0.0
    %163 = vadd.xlane.f32.xlu0 %v162
    %v164 = vpop.xlane.xlu0 %163
    %v165 = vsel %vm149, %v161, 0.0
    %166 = vadd.xlane.f32.xlu0 %v165
    %v167 = vpop.xlane.xlu0 %166
    %v168 = vrcp.pop %v164
    %v169 = vrcp.pop %v167
    %v170 = vmul.f32 %v159, %v168
    %v171 = vmul.f32 %v161, %v169
    %v172 = vpack.c.bf16 %v170, %v170
    %v173 = vpack.c.bf16 %v171, %v171
    %174 = vrot.lane.b32.xlu0 %v92, 64
    %v175 = vpop.permute.xlu0 %174
    %v177 = vsel %vm149, %v172, 0
    %vm179 = vcmask 1043456
    %v181 = vsel %vm179, %v175, 0
    %183 = vmatpush.bf16.msra.mxu0 0
    %184 = vmatpush.bf16.msra.mxu0 0
    %185 = vmatpush.bf16.msra.mxu0 0
    %186 = vmatpush.bf16.msra.mxu0 0
    %187 = vmatpush.bf16.msra.mxu0 0
    %188 = vmatpush.bf16.msra.mxu0 0
    %189 = vmatpush.bf16.msra.mxu0 0
    %190 = vmatpush.bf16.msra.mxu0 %v181
    %191 = vmatmul.bf16.gmra.mxu0 %v177
    %v192 = vpop.f32.mrf.mxu0
    %v193 = vadd.f32 0.0, %v192
    %v194 = vpop.f32.mrf.mxu0
    %195 = vdwg.mxu0
    %196 = vrot.lane.b32.xlu0 %v117, 64
    %v197 = vpop.permute.xlu0 %196
    %v199 = vsel %vm149, %v173, 0
    %v202 = vsel %vm179, %v197, 0
    %204 = vmatpush.bf16.msra.mxu0 0
    %205 = vmatpush.bf16.msra.mxu0 0
    %206 = vmatpush.bf16.msra.mxu0 0
    %207 = vmatpush.bf16.msra.mxu0 0
    %208 = vmatpush.bf16.msra.mxu0 0
    %209 = vmatpush.bf16.msra.mxu0 0
    %210 = vmatpush.bf16.msra.mxu0 0
    %211 = vmatpush.bf16.msra.mxu0 %v202
    %212 = vmatmul.bf16.gmra.mxu0 %v199
    %v213 = vpop.f32.mrf.mxu0
    %v214 = vadd.f32 0.0, %v213
    %v215 = vpop.f32.mrf.mxu0
    %216 = vdwg.mxu0
    %217 = vrot.lane.b32.xlu0 %v92, 112
    %v218 = vpop.permute.xlu0 %217
    %219 = vrot.lane.b32.xlu0 %v92, 80
    %v220 = vpop.permute.xlu0 %219
    %v222 = vsel %vm95, %v218, 0
    %v225 = vsel %vm95, %v220, 0
    %227 = vmatpush.bf16.xpose.msra.mxu0 0
    %228 = vmatpush.bf16.xpose.msra.mxu0 0
    %229 = vmatpush.bf16.xpose.msra.mxu0 0
    %230 = vmatpush.bf16.xpose.msra.mxu0 0
    %231 = vmatpush.bf16.xpose.msra.mxu0 0
    %232 = vmatpush.bf16.xpose.msra.mxu0 0
    %233 = vmatpush.bf16.xpose.msra.mxu0 0
    %234 = vmatpush.bf16.xpose.msra.mxu0 %v225
    %235 = vmatmul.bf16.gmra.mxu0 %v222
    %v236 = vpop.f32.mrf.mxu0
    %v237 = vadd.f32 0.0, %v236
    %v238 = vpop.f32.mrf.mxu0
    %239 = vdwg.mxu0
    %240 = vrot.lane.b32.xlu0 %v117, 112
    %v241 = vpop.permute.xlu0 %240
    %242 = vrot.lane.b32.xlu0 %v117, 80
    %v243 = vpop.permute.xlu0 %242
    %v245 = vsel %vm95, %v241, 0
    %v248 = vsel %vm95, %v243, 0
    %250 = vmatpush.bf16.xpose.msra.mxu0 0
    %251 = vmatpush.bf16.xpose.msra.mxu0 0
    %252 = vmatpush.bf16.xpose.msra.mxu0 0
    %253 = vmatpush.bf16.xpose.msra.mxu0 0
    %254 = vmatpush.bf16.xpose.msra.mxu0 0
    %255 = vmatpush.bf16.xpose.msra.mxu0 0
    %256 = vmatpush.bf16.xpose.msra.mxu0 0
    %257 = vmatpush.bf16.xpose.msra.mxu0 %v248
    %258 = vmatmul.bf16.gmra.mxu0 %v245
    %v259 = vpop.f32.mrf.mxu0
    %v260 = vadd.f32 0.0, %v259
    %v261 = vpop.f32.mrf.mxu0
    %262 = vdwg.mxu0
    %v263 = vmul.f32 %v237, 0.25
    %v264 = vmul.f32 %v260, 0.25
    %v265 = vadd.f32 %v263, %v143
    %v266 = vadd.f32 %v264, %v144
    %v267 = vsel %vm149, %v265, -inf
    %268 = vmax.xlane.f32.xlu0 %v267
    %v269 = vpop.xlane.xlu0 %268
    %v270 = vsel %vm149, %v266, -inf
    %271 = vmax.xlane.f32.xlu0 %v270
    %v272 = vpop.xlane.xlu0 %271
    %v273 = vsub.f32 %v265, %v269
    %v274 = vsub.f32 %v266, %v272
    %v275 = vmul.f32 %v273, 1.442695
    %v276 = vpow.pop %v275
    %v277 = vmul.f32 %v274, 1.442695
    %v278 = vpow.pop %v277
    %v279 = vsel %vm149, %v276, 0.0
    %280 = vadd.xlane.f32.xlu0 %v279
    %v281 = vpop.xlane.xlu0 %280
    %v282 = vsel %vm149, %v278, 0.0
    %283 = vadd.xlane.f32.xlu0 %v282
    %v284 = vpop.xlane.xlu0 %283
    %v285 = vrcp.pop %v281
    %v286 = vrcp.pop %v284
    %v287 = vmul.f32 %v276, %v285
    %v288 = vmul.f32 %v278, %v286
    %v289 = vpack.c.bf16 %v287, %v287
    %v290 = vpack.c.bf16 %v288, %v288
    %291 = vrot.lane.b32.xlu0 %v92, 48
    %v292 = vpop.permute.xlu0 %291
    %v294 = vsel %vm149, %v289, 0
    %v297 = vsel %vm179, %v292, 0
    %299 = vmatpush.bf16.msra.mxu0 0
    %300 = vmatpush.bf16.msra.mxu0 0
    %301 = vmatpush.bf16.msra.mxu0 0
    %302 = vmatpush.bf16.msra.mxu0 0
    %303 = vmatpush.bf16.msra.mxu0 0
    %304 = vmatpush.bf16.msra.mxu0 0
    %305 = vmatpush.bf16.msra.mxu0 0
    %306 = vmatpush.bf16.msra.mxu0 %v297
    %307 = vmatmul.bf16.gmra.mxu0 %v294
    %v308 = vpop.f32.mrf.mxu0
    %v309 = vadd.f32 0.0, %v308
    %v310 = vpop.f32.mrf.mxu0
    %311 = vdwg.mxu0
    %312 = vrot.lane.b32.xlu0 %v117, 48
    %v313 = vpop.permute.xlu0 %312
    %v315 = vsel %vm149, %v290, 0
    %v318 = vsel %vm179, %v313, 0
    %320 = vmatpush.bf16.msra.mxu0 0
    %321 = vmatpush.bf16.msra.mxu0 0
    %322 = vmatpush.bf16.msra.mxu0 0
    %323 = vmatpush.bf16.msra.mxu0 0
    %324 = vmatpush.bf16.msra.mxu0 0
    %325 = vmatpush.bf16.msra.mxu0 0
    %326 = vmatpush.bf16.msra.mxu0 0
    %327 = vmatpush.bf16.msra.mxu0 %v318
    %328 = vmatmul.bf16.gmra.mxu0 %v315
    %v329 = vpop.f32.mrf.mxu0
    %v330 = vadd.f32 0.0, %v329
    %v331 = vpop.f32.mrf.mxu0
    %332 = vdwg.mxu0
    %335 = vrot.lane.b32.xlu0 %v309, 16
    %v336 = vpop.permute.xlu0 %335
    %337 = vrot.lane.b32.xlu0 %v330, 16
    %v338 = vpop.permute.xlu0 %337
    %v341 = vsel %vm95, %v193, %v336
    %v342 = vsel %vm95, %v214, %v338
    %v343 = vld [vmem:[%s6] sm:$0xf]
    %v344 = vld [vmem:[%s6 + $0x4] sm:$0xf]
    %v345 = vld [vmem:[%s6 + $0x8] sm:$0xf]
    %v346 = vld [vmem:[%s6 + $0xc] sm:$0xf]
    %v347 = vpack.c.bf16 %v342, %v341
    %v348 = vperm.slane %v48, 0
    %v353 = vunpack.c.l.b16 %v343
    %v354 = vunpack.c.l.b16 %v344
    %v355 = vunpack.c.l.b16 %v345
    %v356 = vunpack.c.l.b16 %v346
    %v357 = vpack.c.b16 %v354, %v353
    %v358 = vpack.c.b16 %v356, %v355
    %v362 = vsel %vm70, %v347, 0
    %364 = vmatpush.bf16.msra.mxu0 0
    %365 = vmatpush.bf16.msra.mxu0 0
    %366 = vmatpush.bf16.msra.mxu0 0
    %367 = vmatpush.bf16.msra.mxu0 0
    %368 = vmatpush.bf16.msra.mxu0 0
    %369 = vmatpush.bf16.msra.mxu0 0
    %370 = vmatpush.bf16.msra.mxu0 %v358
    %371 = vmatpush.bf16.msra.mxu0 %v357
    %372 = vmatmul.bf16.gmra.mxu0 %v362
    %v373 = vpop.f32.mrf.mxu0
    %v374 = vadd.f32 %v348, %v373
    %v375 = vpop.f32.mrf.mxu0
    %v376 = vadd.f32 %v348, %v375
    %377 = vdwg.mxu0
    %v378 = vadd.f32 %v40, %v374
    %v379 = vadd.f32 %v41, %v376
    %v380 = vsel %vm70, %v378, 0.0
    %381 = vadd.xlane.f32.xlu0 %v380
    %v382 = vpop.xlane.xlu0 %381
    %v383 = vsel %vm70, %v379, 0.0
    %384 = vadd.xlane.f32.xlu0 %v383
    %v385 = vpop.xlane.xlu0 %384
    %v386 = vrcp.pop 32.0
    %v387 = vmul.f32 32.0, %v386
    %v388 = vsub.f32 1.0, %v387
    %v389 = vmul.f32 %v386, %v388
    %v390 = vadd.f32 %v386, %v389
    %vm391 = vweird.f32 %v386
    %v392 = vsel %vm391, %v386, %v390
    %v393 = vmul.f32 %v382, %v392
    %v394 = vmul.f32 %v385, %v392
    %v395 = vsub.f32 %v378, %v393
    %v396 = vsub.f32 %v379, %v394
    %v397 = vmul.f32 %v395, %v395
    %v398 = vmul.f32 %v396, %v396
    %v399 = vsel %vm70, %v397, 0.0
    %400 = vadd.xlane.f32.xlu0 %v399
    %v401 = vpop.xlane.xlu0 %400
    %v402 = vsel %vm70, %v398, 0.0
    %403 = vadd.xlane.f32.xlu0 %v402
    %v404 = vpop.xlane.xlu0 %403
    %v405 = vmul.f32 %v401, %v392
    %v406 = vmul.f32 %v404, %v392
    %v407 = vadd.f32 %v405, 1e-05
    %v408 = vadd.f32 %v406, 1e-05
    %v409 = vrsqrt.pop %v407
    %v410 = vmul.f32 %v409, %v407
    %v411 = vmul.f32 %v410, %v409
    %v412 = vmul.f32 0.5, %v411
    %v413 = vsub.f32 1.5, %v412
    %v414 = vmul.f32 %v409, %v413
    %vm415 = vweird.f32 %v407
    %vm416 = vweird.f32 %v409
    %vm417 = vmor %vm415, %vm416
    %v418 = vsel %vm417, %v409, %v414
    %v419 = vrsqrt.pop %v408
    %v420 = vmul.f32 %v419, %v408
    %v421 = vmul.f32 %v420, %v419
    %v422 = vmul.f32 0.5, %v421
    %v423 = vsub.f32 1.5, %v422
    %v424 = vmul.f32 %v419, %v423
    %vm425 = vweird.f32 %v408
    %vm426 = vweird.f32 %v419
    %vm427 = vmor %vm425, %vm426
    %v428 = vsel %vm427, %v419, %v424
    %v429 = vmul.f32 %v395, %v418
    %v430 = vmul.f32 %v396, %v428
    %v431 = vperm.slane %v48, 1
    %v432 = vmul.f32 %v429, %v431
    %v433 = vmul.f32 %v430, %v431
    %v434 = vperm.slane %v48, 2
    %v435 = vadd.f32 %v432, %v434
    %v436 = vadd.f32 %v433, %v434
    %438 = vset.pattern.permute.xlu0 0
    %439 = vperm.xlu0 %438, %v44
    %v440 = vpop.permute.xlu0 %439
    %443 = vset.pattern.permute.xlu0 0
    %444 = vperm.xlu0 %443, %v45
    %v445 = vpop.permute.xlu0 %444
    %v447 = vmul.f32 %v435, %v440
    %v448 = vmul.f32 %v436, %v445
    %v449 = vld [vmem:[%s8] sm:$0xf]
    %v450 = vld [vmem:[%s8 + $0x4] sm:$0xf]
    %v451 = vld [vmem:[%s8 + $0x8] sm:$0xf]
    %v452 = vld [vmem:[%s8 + $0xc] sm:$0xf]
    %v453 = vld [vmem:[%s8 + $0x10] sm:$0xf]
    %v454 = vld [vmem:[%s8 + $0x14] sm:$0xf]
    %v455 = vld [vmem:[%s8 + $0x18] sm:$0xf]
    %v456 = vld [vmem:[%s8 + $0x1c] sm:$0xf]
    %v457 = vld [vmem:[%s8 + $0x20] sm:$0xf]
    %v458 = vld [vmem:[%s8 + $0x24] sm:$0xf]
    %v459 = vld [vmem:[%s8 + $0x28] sm:$0xf]
    %v460 = vld [vmem:[%s8 + $0x2c] sm:$0xf]
    %v461 = vld [vmem:[%s9] sm:$0x1]
    %vm462 = vcmp.ge.s32.totalorder %v46, 1
    %vm463 = vcmp.ge.s32.totalorder %v47, 1
    %v464 = vrot.slane %v447, 7
    %v465 = vrot.slane %v448, 7
    %v466 = vlaneseq
    %v467 = vshrl.u32 %v466, 7
    %vm468 = vcmp.lt.s32.totalorder %v467, 1
    %v469 = vsel %vm468, %v464, %v465
    %v470 = vsel %vm468, %v465, %v464
    %v471 = vsel %vm462, 1, 0
    %v472 = vsel %vm463, 1, 0
    %473 = vset.pattern.permute.xlu0 0
    %474 = vperm.xlu0 %473, %v471
    %v475 = vpop.permute.xlu0 %474
    %476 = vset.pattern.permute.xlu0 0
    %477 = vperm.xlu0 %476, %v472
    %v478 = vpop.permute.xlu0 %477
    %vm479 = vcmp.eq.s32.totalorder %v475, 1
    %vm480 = vcmp.eq.s32.totalorder %v478, 1
    %v481 = vsel %vm479, %v470, 0.0
    %v482 = vsel %vm480, %v469, 0.0
    %vm483 = vcmp.lt.s32.totalorder %v46, 7
    %vm484 = vcmp.lt.s32.totalorder %v47, 7
    %v485 = vrot.slane %v447, 1
    %v486 = vrot.slane %v448, 1
    %vm487 = vcmp.lt.s32.totalorder %v467, 7
    %v488 = vsel %vm487, %v485, %v486
    %v489 = vsel %vm487, %v486, %v485
    %v490 = vsel %vm483, 1, 0
    %v491 = vsel %vm484, 1, 0
    %492 = vset.pattern.permute.xlu0 0
    %493 = vperm.xlu0 %492, %v490
    %v494 = vpop.permute.xlu0 %493
    %495 = vset.pattern.permute.xlu0 0
    %496 = vperm.xlu0 %495, %v491
    %v497 = vpop.permute.xlu0 %496
    %vm498 = vcmp.eq.s32.totalorder %v494, 1
    %vm499 = vcmp.eq.s32.totalorder %v497, 1
    %v500 = vsel %vm498, %v488, 0.0
    %v501 = vsel %vm499, %v489, 0.0
    %504 = vrot.lane.b32.xlu0 %v447, 32
    %v505 = vpop.permute.xlu0 %504
    %506 = vrot.lane.b32.xlu0 %v448, 32
    %v507 = vpop.permute.xlu0 %506
    %512 = vrot.lane.b32.xlu0 %v500, 64
    %v513 = vpop.permute.xlu0 %512
    %514 = vrot.lane.b32.xlu0 %v501, 64
    %v515 = vpop.permute.xlu0 %514
    %v518 = vsel %vm70, %v481, %v505
    %v519 = vsel %vm70, %v482, %v507
    %vm520 = vcmask 523264
    %v521 = vsel %vm520, %v518, %v513
    %v522 = vsel %vm520, %v519, %v515
    %v523 = vpack.c.bf16 %v522, %v521
    %v525 = vperm.slane %v461, 0
    %v539 = vunpack.c.l.b16 %v449
    %v540 = vunpack.c.l.b16 %v450
    %v541 = vunpack.c.l.b16 %v451
    %v542 = vunpack.c.l.b16 %v452
    %v543 = vunpack.c.l.b16 %v453
    %v544 = vunpack.c.l.b16 %v454
    %v545 = vunpack.c.l.b16 %v455
    %v546 = vunpack.c.l.b16 %v456
    %v547 = vunpack.c.l.b16 %v457
    %v548 = vunpack.c.l.b16 %v458
    %v549 = vunpack.c.l.b16 %v459
    %v550 = vunpack.c.l.b16 %v460
    %v551 = vpack.c.b16 %v540, %v539
    %v552 = vpack.c.b16 %v542, %v541
    %v553 = vpack.c.b16 %v544, %v543
    %v554 = vpack.c.b16 %v546, %v545
    %v555 = vpack.c.b16 %v548, %v547
    %v556 = vpack.c.b16 %v550, %v549
    %vm563 = vcmask 785408
    %v565 = vsel %vm563, %v523, 0
    %567 = vmatpush.bf16.msra.mxu0 0
    %568 = vmatpush.bf16.msra.mxu0 0
    %569 = vmatpush.bf16.msra.mxu0 %v556
    %570 = vmatpush.bf16.msra.mxu0 %v555
    %571 = vmatpush.bf16.msra.mxu0 %v554
    %572 = vmatpush.bf16.msra.mxu0 %v553
    %573 = vmatpush.bf16.msra.mxu0 %v552
    %574 = vmatpush.bf16.msra.mxu0 %v551
    %575 = vmatmul.bf16.gmra.mxu0 %v565
    %v576 = vpop.f32.mrf.mxu0
    %v577 = vadd.f32 %v525, %v576
    %v578 = vpop.f32.mrf.mxu0
    %v579 = vadd.f32 %v525, %v578
    %580 = vdwg.mxu0
    %v581 = vmax.f32 %v577, 0.0
    %v582 = vmax.f32 %v579, 0.0
    %v583 = vld [vmem:[%s10] sm:$0xf]
    %v584 = vld [vmem:[%s10 + $0x4] sm:$0xf]
    %v585 = vld [vmem:[%s10 + $0x8] sm:$0xf]
    %v586 = vld [vmem:[%s10 + $0xc] sm:$0xf]
    %v587 = vld [vmem:[%s10 + $0x10] sm:$0xf]
    %v588 = vld [vmem:[%s10 + $0x14] sm:$0xf]
    %v589 = vld [vmem:[%s10 + $0x18] sm:$0xf]
    %v590 = vld [vmem:[%s10 + $0x1c] sm:$0xf]
    %v591 = vpack.c.bf16 %v582, %v581
    %v592 = vperm.slane %v48, 3
    %v601 = vunpack.c.l.b16 %v583
    %v602 = vunpack.c.l.b16 %v584
    %v603 = vunpack.c.l.b16 %v585
    %v604 = vunpack.c.l.b16 %v586
    %v605 = vunpack.c.l.b16 %v587
    %v606 = vunpack.c.l.b16 %v588
    %v607 = vunpack.c.l.b16 %v589
    %v608 = vunpack.c.l.b16 %v590
    %v609 = vpack.c.b16 %v602, %v601
    %v610 = vpack.c.b16 %v604, %v603
    %v611 = vpack.c.b16 %v606, %v605
    %v612 = vpack.c.b16 %v608, %v607
    %v618 = vsel %vm520, %v591, 0
    %620 = vmatpush.bf16.msra.mxu0 0
    %621 = vmatpush.bf16.msra.mxu0 0
    %622 = vmatpush.bf16.msra.mxu0 0
    %623 = vmatpush.bf16.msra.mxu0 0
    %624 = vmatpush.bf16.msra.mxu0 %v612
    %625 = vmatpush.bf16.msra.mxu0 %v611
    %626 = vmatpush.bf16.msra.mxu0 %v610
    %627 = vmatpush.bf16.msra.mxu0 %v609
    %628 = vmatmul.bf16.gmra.mxu0 %v618
    %v629 = vpop.f32.mrf.mxu0
    %v630 = vadd.f32 %v592, %v629
    %v631 = vpop.f32.mrf.mxu0
    %v632 = vadd.f32 %v592, %v631
    %633 = vdwg.mxu0
    %v634 = vadd.f32 %v447, %v630
    %v635 = vadd.f32 %v448, %v632
    %v636 = vsel %vm70, %v634, 0.0
    %637 = vadd.xlane.f32.xlu0 %v636
    %v638 = vpop.xlane.xlu0 %637
    %v639 = vsel %vm70, %v635, 0.0
    %640 = vadd.xlane.f32.xlu0 %v639
    %v641 = vpop.xlane.xlu0 %640
    %v642 = vmul.f32 %v638, %v392
    %v643 = vmul.f32 %v641, %v392
    %v644 = vsub.f32 %v634, %v642
    %v645 = vsub.f32 %v635, %v643
    %v646 = vmul.f32 %v644, %v644
    %v647 = vmul.f32 %v645, %v645
    %v648 = vsel %vm70, %v646, 0.0
    %649 = vadd.xlane.f32.xlu0 %v648
    %v650 = vpop.xlane.xlu0 %649
    %v651 = vsel %vm70, %v647, 0.0
    %652 = vadd.xlane.f32.xlu0 %v651
    %v653 = vpop.xlane.xlu0 %652
    %v654 = vmul.f32 %v650, %v392
    %v655 = vmul.f32 %v653, %v392
    %v656 = vadd.f32 %v654, 1e-05
    %v657 = vadd.f32 %v655, 1e-05
    %v658 = vrsqrt.pop %v656
    %v659 = vmul.f32 %v658, %v656
    %v660 = vmul.f32 %v659, %v658
    %v661 = vmul.f32 0.5, %v660
    %v662 = vsub.f32 1.5, %v661
    %v663 = vmul.f32 %v658, %v662
    %vm664 = vweird.f32 %v656
    %vm665 = vweird.f32 %v658
    %vm666 = vmor %vm664, %vm665
    %v667 = vsel %vm666, %v658, %v663
    %v668 = vrsqrt.pop %v657
    %v669 = vmul.f32 %v668, %v657
    %v670 = vmul.f32 %v669, %v668
    %v671 = vmul.f32 0.5, %v670
    %v672 = vsub.f32 1.5, %v671
    %v673 = vmul.f32 %v668, %v672
    %vm674 = vweird.f32 %v657
    %vm675 = vweird.f32 %v668
    %vm676 = vmor %vm674, %vm675
    %v677 = vsel %vm676, %v668, %v673
    %v678 = vmul.f32 %v644, %v667
    %v679 = vmul.f32 %v645, %v677
    %v680 = vperm.slane %v48, 4
    %v681 = vmul.f32 %v678, %v680
    %v682 = vmul.f32 %v679, %v680
    %v683 = vperm.slane %v48, 5
    %v684 = vadd.f32 %v681, %v683
    %v685 = vadd.f32 %v682, %v683
    %v686 = vmul.f32 %v684, %v440
    %v687 = vmul.f32 %v685, %v445
    %s688 = scalar_lea.vmem %s7, 8
    %v689 = vld [vmem:[%s688] sm:$0x3f]
    %s690 = scalar_lea.vmem %s4, 16
    %v691 = vld [vmem:[%s690] sm:$0xf]
    %v692 = vld [vmem:[%s690 + $0x4] sm:$0xf]
    %v693 = vld [vmem:[%s690 + $0x8] sm:$0xf]
    %v694 = vld [vmem:[%s690 + $0xc] sm:$0xf]
    %v695 = vpack.c.bf16 %v687, %v686
    %s696 = scalar_lea.vmem %s5, 1
    %v697 = vld [vmem:[%s696] sm:$0x1]
    %v699 = vperm.slane %v697, 0
    %v705 = vunpack.c.l.b16 %v691
    %v706 = vunpack.c.l.b16 %v692
    %v707 = vunpack.c.l.b16 %v693
    %v708 = vunpack.c.l.b16 %v694
    %v709 = vpack.c.b16 %v706, %v705
    %v710 = vpack.c.b16 %v708, %v707
    %v714 = vsel %vm70, %v695, 0
    %716 = vmatpush.bf16.msra.mxu0 0
    %717 = vmatpush.bf16.msra.mxu0 0
    %718 = vmatpush.bf16.msra.mxu0 0
    %719 = vmatpush.bf16.msra.mxu0 0
    %720 = vmatpush.bf16.msra.mxu0 0
    %721 = vmatpush.bf16.msra.mxu0 0
    %722 = vmatpush.bf16.msra.mxu0 %v710
    %723 = vmatpush.bf16.msra.mxu0 %v709
    %724 = vmatmul.bf16.gmra.mxu0 %v714
    %v725 = vpop.f32.mrf.mxu0
    %v726 = vadd.f32 %v699, %v725
    %v727 = vpop.f32.mrf.mxu0
    %v728 = vadd.f32 %v699, %v727
    %729 = vdwg.mxu0
    %v730 = vpack.c.bf16 %v726, %v726
    %v731 = vpack.c.bf16 %v728, %v728
    %v733 = vunpack.c.l.b16 %v730
    %v734 = vpack.c.b16 %v733, %v733
    %735 = vrot.lane.b32.xlu0 %v734, 96
    %v736 = vpop.permute.xlu0 %735
    %v738 = vsel %vm95, %v730, 0
    %v741 = vsel %vm95, %v736, 0
    %743 = vmatpush.bf16.xpose.msra.mxu0 0
    %744 = vmatpush.bf16.xpose.msra.mxu0 0
    %745 = vmatpush.bf16.xpose.msra.mxu0 0
    %746 = vmatpush.bf16.xpose.msra.mxu0 0
    %747 = vmatpush.bf16.xpose.msra.mxu0 0
    %748 = vmatpush.bf16.xpose.msra.mxu0 0
    %749 = vmatpush.bf16.xpose.msra.mxu0 0
    %750 = vmatpush.bf16.xpose.msra.mxu0 %v741
    %751 = vmatmul.bf16.gmra.mxu0 %v738
    %v752 = vpop.f32.mrf.mxu0
    %v753 = vadd.f32 0.0, %v752
    %v754 = vpop.f32.mrf.mxu0
    %755 = vdwg.mxu0
    %v757 = vunpack.c.l.b16 %v731
    %v758 = vpack.c.b16 %v757, %v757
    %759 = vrot.lane.b32.xlu0 %v758, 96
    %v760 = vpop.permute.xlu0 %759
    %v762 = vsel %vm95, %v731, 0
    %v765 = vsel %vm95, %v760, 0
    %767 = vmatpush.bf16.xpose.msra.mxu0 0
    %768 = vmatpush.bf16.xpose.msra.mxu0 0
    %769 = vmatpush.bf16.xpose.msra.mxu0 0
    %770 = vmatpush.bf16.xpose.msra.mxu0 0
    %771 = vmatpush.bf16.xpose.msra.mxu0 0
    %772 = vmatpush.bf16.xpose.msra.mxu0 0
    %773 = vmatpush.bf16.xpose.msra.mxu0 0
    %774 = vmatpush.bf16.xpose.msra.mxu0 %v765
    %775 = vmatmul.bf16.gmra.mxu0 %v762
    %v776 = vpop.f32.mrf.mxu0
    %v777 = vadd.f32 0.0, %v776
    %v778 = vpop.f32.mrf.mxu0
    %779 = vdwg.mxu0
    %v780 = vmul.f32 %v753, 0.25
    %v781 = vmul.f32 %v777, 0.25
    %v782 = vadd.f32 %v780, %v143
    %v783 = vadd.f32 %v781, %v144
    %v784 = vsel %vm149, %v782, -inf
    %785 = vmax.xlane.f32.xlu0 %v784
    %v786 = vpop.xlane.xlu0 %785
    %v787 = vsel %vm149, %v783, -inf
    %788 = vmax.xlane.f32.xlu0 %v787
    %v789 = vpop.xlane.xlu0 %788
    %v790 = vsub.f32 %v782, %v786
    %v791 = vsub.f32 %v783, %v789
    %v792 = vmul.f32 %v790, 1.442695
    %v793 = vpow.pop %v792
    %v794 = vmul.f32 %v791, 1.442695
    %v795 = vpow.pop %v794
    %v796 = vsel %vm149, %v793, 0.0
    %797 = vadd.xlane.f32.xlu0 %v796
    %v798 = vpop.xlane.xlu0 %797
    %v799 = vsel %vm149, %v795, 0.0
    %800 = vadd.xlane.f32.xlu0 %v799
    %v801 = vpop.xlane.xlu0 %800
    %v802 = vrcp.pop %v798
    %v803 = vrcp.pop %v801
    %v804 = vmul.f32 %v793, %v802
    %v805 = vmul.f32 %v795, %v803
    %v806 = vpack.c.bf16 %v804, %v804
    %v807 = vpack.c.bf16 %v805, %v805
    %808 = vrot.lane.b32.xlu0 %v734, 64
    %v809 = vpop.permute.xlu0 %808
    %v811 = vsel %vm149, %v806, 0
    %v814 = vsel %vm179, %v809, 0
    %816 = vmatpush.bf16.msra.mxu0 0
    %817 = vmatpush.bf16.msra.mxu0 0
    %818 = vmatpush.bf16.msra.mxu0 0
    %819 = vmatpush.bf16.msra.mxu0 0
    %820 = vmatpush.bf16.msra.mxu0 0
    %821 = vmatpush.bf16.msra.mxu0 0
    %822 = vmatpush.bf16.msra.mxu0 0
    %823 = vmatpush.bf16.msra.mxu0 %v814
    %824 = vmatmul.bf16.gmra.mxu0 %v811
    %v825 = vpop.f32.mrf.mxu0
    %v826 = vadd.f32 0.0, %v825
    %v827 = vpop.f32.mrf.mxu0
    %828 = vdwg.mxu0
    %829 = vrot.lane.b32.xlu0 %v758, 64
    %v830 = vpop.permute.xlu0 %829
    %v832 = vsel %vm149, %v807, 0
    %v835 = vsel %vm179, %v830, 0
    %837 = vmatpush.bf16.msra.mxu0 0
    %838 = vmatpush.bf16.msra.mxu0 0
    %839 = vmatpush.bf16.msra.mxu0 0
    %840 = vmatpush.bf16.msra.mxu0 0
    %841 = vmatpush.bf16.msra.mxu0 0
    %842 = vmatpush.bf16.msra.mxu0 0
    %843 = vmatpush.bf16.msra.mxu0 0
    %844 = vmatpush.bf16.msra.mxu0 %v835
    %845 = vmatmul.bf16.gmra.mxu0 %v832
    %v846 = vpop.f32.mrf.mxu0
    %v847 = vadd.f32 0.0, %v846
    %v848 = vpop.f32.mrf.mxu0
    %849 = vdwg.mxu0
    %850 = vrot.lane.b32.xlu0 %v734, 112
    %v851 = vpop.permute.xlu0 %850
    %852 = vrot.lane.b32.xlu0 %v734, 80
    %v853 = vpop.permute.xlu0 %852
    %v855 = vsel %vm95, %v851, 0
    %v858 = vsel %vm95, %v853, 0
    %860 = vmatpush.bf16.xpose.msra.mxu0 0
    %861 = vmatpush.bf16.xpose.msra.mxu0 0
    %862 = vmatpush.bf16.xpose.msra.mxu0 0
    %863 = vmatpush.bf16.xpose.msra.mxu0 0
    %864 = vmatpush.bf16.xpose.msra.mxu0 0
    %865 = vmatpush.bf16.xpose.msra.mxu0 0
    %866 = vmatpush.bf16.xpose.msra.mxu0 0
    %867 = vmatpush.bf16.xpose.msra.mxu0 %v858
    %868 = vmatmul.bf16.gmra.mxu0 %v855
    %v869 = vpop.f32.mrf.mxu0
    %v870 = vadd.f32 0.0, %v869
    %v871 = vpop.f32.mrf.mxu0
    %872 = vdwg.mxu0
    %873 = vrot.lane.b32.xlu0 %v758, 112
    %v874 = vpop.permute.xlu0 %873
    %875 = vrot.lane.b32.xlu0 %v758, 80
    %v876 = vpop.permute.xlu0 %875
    %v878 = vsel %vm95, %v874, 0
    %v881 = vsel %vm95, %v876, 0
    %883 = vmatpush.bf16.xpose.msra.mxu0 0
    %884 = vmatpush.bf16.xpose.msra.mxu0 0
    %885 = vmatpush.bf16.xpose.msra.mxu0 0
    %886 = vmatpush.bf16.xpose.msra.mxu0 0
    %887 = vmatpush.bf16.xpose.msra.mxu0 0
    %888 = vmatpush.bf16.xpose.msra.mxu0 0
    %889 = vmatpush.bf16.xpose.msra.mxu0 0
    %890 = vmatpush.bf16.xpose.msra.mxu0 %v881
    %891 = vmatmul.bf16.gmra.mxu0 %v878
    %v892 = vpop.f32.mrf.mxu0
    %v893 = vadd.f32 0.0, %v892
    %v894 = vpop.f32.mrf.mxu0
    %895 = vdwg.mxu0
    %v896 = vmul.f32 %v870, 0.25
    %v897 = vmul.f32 %v893, 0.25
    %v898 = vadd.f32 %v896, %v143
    %v899 = vadd.f32 %v897, %v144
    %v900 = vsel %vm149, %v898, -inf
    %901 = vmax.xlane.f32.xlu0 %v900
    %v902 = vpop.xlane.xlu0 %901
    %v903 = vsel %vm149, %v899, -inf
    %904 = vmax.xlane.f32.xlu0 %v903
    %v905 = vpop.xlane.xlu0 %904
    %v906 = vsub.f32 %v898, %v902
    %v907 = vsub.f32 %v899, %v905
    %v908 = vmul.f32 %v906, 1.442695
    %v909 = vpow.pop %v908
    %v910 = vmul.f32 %v907, 1.442695
    %v911 = vpow.pop %v910
    %v912 = vsel %vm149, %v909, 0.0
    %913 = vadd.xlane.f32.xlu0 %v912
    %v914 = vpop.xlane.xlu0 %913
    %v915 = vsel %vm149, %v911, 0.0
    %916 = vadd.xlane.f32.xlu0 %v915
    %v917 = vpop.xlane.xlu0 %916
    %v918 = vrcp.pop %v914
    %v919 = vrcp.pop %v917
    %v920 = vmul.f32 %v909, %v918
    %v921 = vmul.f32 %v911, %v919
    %v922 = vpack.c.bf16 %v920, %v920
    %v923 = vpack.c.bf16 %v921, %v921
    %924 = vrot.lane.b32.xlu0 %v734, 48
    %v925 = vpop.permute.xlu0 %924
    %v927 = vsel %vm149, %v922, 0
    %v930 = vsel %vm179, %v925, 0
    %932 = vmatpush.bf16.msra.mxu0 0
    %933 = vmatpush.bf16.msra.mxu0 0
    %934 = vmatpush.bf16.msra.mxu0 0
    %935 = vmatpush.bf16.msra.mxu0 0
    %936 = vmatpush.bf16.msra.mxu0 0
    %937 = vmatpush.bf16.msra.mxu0 0
    %938 = vmatpush.bf16.msra.mxu0 0
    %939 = vmatpush.bf16.msra.mxu0 %v930
    %940 = vmatmul.bf16.gmra.mxu0 %v927
    %v941 = vpop.f32.mrf.mxu0
    %v942 = vadd.f32 0.0, %v941
    %v943 = vpop.f32.mrf.mxu0
    %944 = vdwg.mxu0
    %945 = vrot.lane.b32.xlu0 %v758, 48
    %v946 = vpop.permute.xlu0 %945
    %v948 = vsel %vm149, %v923, 0
    %v951 = vsel %vm179, %v946, 0
    %953 = vmatpush.bf16.msra.mxu0 0
    %954 = vmatpush.bf16.msra.mxu0 0
    %955 = vmatpush.bf16.msra.mxu0 0
    %956 = vmatpush.bf16.msra.mxu0 0
    %957 = vmatpush.bf16.msra.mxu0 0
    %958 = vmatpush.bf16.msra.mxu0 0
    %959 = vmatpush.bf16.msra.mxu0 0
    %960 = vmatpush.bf16.msra.mxu0 %v951
    %961 = vmatmul.bf16.gmra.mxu0 %v948
    %v962 = vpop.f32.mrf.mxu0
    %v963 = vadd.f32 0.0, %v962
    %v964 = vpop.f32.mrf.mxu0
    %965 = vdwg.mxu0
    %968 = vrot.lane.b32.xlu0 %v942, 16
    %v969 = vpop.permute.xlu0 %968
    %970 = vrot.lane.b32.xlu0 %v963, 16
    %v971 = vpop.permute.xlu0 %970
    %v974 = vsel %vm95, %v826, %v969
    %v975 = vsel %vm95, %v847, %v971
    %s976 = scalar_lea.vmem %s6, 16
    %v977 = vld [vmem:[%s976] sm:$0xf]
    %v978 = vld [vmem:[%s976 + $0x4] sm:$0xf]
    %v979 = vld [vmem:[%s976 + $0x8] sm:$0xf]
    %v980 = vld [vmem:[%s976 + $0xc] sm:$0xf]
    %v981 = vpack.c.bf16 %v975, %v974
    %v982 = vperm.slane %v689, 0
    %v987 = vunpack.c.l.b16 %v977
    %v988 = vunpack.c.l.b16 %v978
    %v989 = vunpack.c.l.b16 %v979
    %v990 = vunpack.c.l.b16 %v980
    %v991 = vpack.c.b16 %v988, %v987
    %v992 = vpack.c.b16 %v990, %v989
    %v996 = vsel %vm70, %v981, 0
    %998 = vmatpush.bf16.msra.mxu0 0
    %999 = vmatpush.bf16.msra.mxu0 0
    %1000 = vmatpush.bf16.msra.mxu0 0
    %1001 = vmatpush.bf16.msra.mxu0 0
    %1002 = vmatpush.bf16.msra.mxu0 0
    %1003 = vmatpush.bf16.msra.mxu0 0
    %1004 = vmatpush.bf16.msra.mxu0 %v992
    %1005 = vmatpush.bf16.msra.mxu0 %v991
    %1006 = vmatmul.bf16.gmra.mxu0 %v996
    %v1007 = vpop.f32.mrf.mxu0
    %v1008 = vadd.f32 %v982, %v1007
    %v1009 = vpop.f32.mrf.mxu0
    %v1010 = vadd.f32 %v982, %v1009
    %1011 = vdwg.mxu0
    %v1012 = vadd.f32 %v686, %v1008
    %v1013 = vadd.f32 %v687, %v1010
    %v1014 = vsel %vm70, %v1012, 0.0
    %1015 = vadd.xlane.f32.xlu0 %v1014
    %v1016 = vpop.xlane.xlu0 %1015
    %v1017 = vsel %vm70, %v1013, 0.0
    %1018 = vadd.xlane.f32.xlu0 %v1017
    %v1019 = vpop.xlane.xlu0 %1018
    %v1020 = vmul.f32 %v1016, %v392
    %v1021 = vmul.f32 %v1019, %v392
    %v1022 = vsub.f32 %v1012, %v1020
    %v1023 = vsub.f32 %v1013, %v1021
    %v1024 = vmul.f32 %v1022, %v1022
    %v1025 = vmul.f32 %v1023, %v1023
    %v1026 = vsel %vm70, %v1024, 0.0
    %1027 = vadd.xlane.f32.xlu0 %v1026
    %v1028 = vpop.xlane.xlu0 %1027
    %v1029 = vsel %vm70, %v1025, 0.0
    %1030 = vadd.xlane.f32.xlu0 %v1029
    %v1031 = vpop.xlane.xlu0 %1030
    %v1032 = vmul.f32 %v1028, %v392
    %v1033 = vmul.f32 %v1031, %v392
    %v1034 = vadd.f32 %v1032, 1e-05
    %v1035 = vadd.f32 %v1033, 1e-05
    %v1036 = vrsqrt.pop %v1034
    %v1037 = vmul.f32 %v1036, %v1034
    %v1038 = vmul.f32 %v1037, %v1036
    %v1039 = vmul.f32 0.5, %v1038
    %v1040 = vsub.f32 1.5, %v1039
    %v1041 = vmul.f32 %v1036, %v1040
    %vm1042 = vweird.f32 %v1034
    %vm1043 = vweird.f32 %v1036
    %vm1044 = vmor %vm1042, %vm1043
    %v1045 = vsel %vm1044, %v1036, %v1041
    %v1046 = vrsqrt.pop %v1035
    %v1047 = vmul.f32 %v1046, %v1035
    %v1048 = vmul.f32 %v1047, %v1046
    %v1049 = vmul.f32 0.5, %v1048
    %v1050 = vsub.f32 1.5, %v1049
    %v1051 = vmul.f32 %v1046, %v1050
    %vm1052 = vweird.f32 %v1035
    %vm1053 = vweird.f32 %v1046
    %vm1054 = vmor %vm1052, %vm1053
    %v1055 = vsel %vm1054, %v1046, %v1051
    %v1056 = vmul.f32 %v1022, %v1045
    %v1057 = vmul.f32 %v1023, %v1055
    %v1058 = vperm.slane %v689, 1
    %v1059 = vmul.f32 %v1056, %v1058
    %v1060 = vmul.f32 %v1057, %v1058
    %v1061 = vperm.slane %v689, 2
    %v1062 = vadd.f32 %v1059, %v1061
    %v1063 = vadd.f32 %v1060, %v1061
    %v1064 = vmul.f32 %v1062, %v440
    %v1065 = vmul.f32 %v1063, %v445
    %s1066 = scalar_lea.vmem %s8, 48
    %v1067 = vld [vmem:[%s1066] sm:$0xf]
    %v1068 = vld [vmem:[%s1066 + $0x4] sm:$0xf]
    %v1069 = vld [vmem:[%s1066 + $0x8] sm:$0xf]
    %v1070 = vld [vmem:[%s1066 + $0xc] sm:$0xf]
    %v1071 = vld [vmem:[%s1066 + $0x10] sm:$0xf]
    %v1072 = vld [vmem:[%s1066 + $0x14] sm:$0xf]
    %v1073 = vld [vmem:[%s1066 + $0x18] sm:$0xf]
    %v1074 = vld [vmem:[%s1066 + $0x1c] sm:$0xf]
    %v1075 = vld [vmem:[%s1066 + $0x20] sm:$0xf]
    %v1076 = vld [vmem:[%s1066 + $0x24] sm:$0xf]
    %v1077 = vld [vmem:[%s1066 + $0x28] sm:$0xf]
    %v1078 = vld [vmem:[%s1066 + $0x2c] sm:$0xf]
    %s1079 = scalar_lea.vmem %s9, 1
    %v1080 = vld [vmem:[%s1079] sm:$0x1]
    %v1081 = vrot.slane %v1064, 7
    %v1082 = vrot.slane %v1065, 7
    %v1083 = vsel %vm468, %v1081, %v1082
    %v1084 = vsel %vm468, %v1082, %v1081
    %v1085 = vsel %vm479, %v1084, 0.0
    %v1086 = vsel %vm480, %v1083, 0.0
    %v1087 = vrot.slane %v1064, 1
    %v1088 = vrot.slane %v1065, 1
    %v1089 = vsel %vm487, %v1087, %v1088
    %v1090 = vsel %vm487, %v1088, %v1087
    %v1091 = vsel %vm498, %v1089, 0.0
    %v1092 = vsel %vm499, %v1090, 0.0
    %1095 = vrot.lane.b32.xlu0 %v1064, 32
    %v1096 = vpop.permute.xlu0 %1095
    %1097 = vrot.lane.b32.xlu0 %v1065, 32
    %v1098 = vpop.permute.xlu0 %1097
    %1103 = vrot.lane.b32.xlu0 %v1091, 64
    %v1104 = vpop.permute.xlu0 %1103
    %1105 = vrot.lane.b32.xlu0 %v1092, 64
    %v1106 = vpop.permute.xlu0 %1105
    %v1109 = vsel %vm70, %v1085, %v1096
    %v1110 = vsel %vm70, %v1086, %v1098
    %v1111 = vsel %vm520, %v1109, %v1104
    %v1112 = vsel %vm520, %v1110, %v1106
    %v1113 = vpack.c.bf16 %v1112, %v1111
    %v1115 = vperm.slane %v1080, 0
    %v1129 = vunpack.c.l.b16 %v1067
    %v1130 = vunpack.c.l.b16 %v1068
    %v1131 = vunpack.c.l.b16 %v1069
    %v1132 = vunpack.c.l.b16 %v1070
    %v1133 = vunpack.c.l.b16 %v1071
    %v1134 = vunpack.c.l.b16 %v1072
    %v1135 = vunpack.c.l.b16 %v1073
    %v1136 = vunpack.c.l.b16 %v1074
    %v1137 = vunpack.c.l.b16 %v1075
    %v1138 = vunpack.c.l.b16 %v1076
    %v1139 = vunpack.c.l.b16 %v1077
    %v1140 = vunpack.c.l.b16 %v1078
    %v1141 = vpack.c.b16 %v1130, %v1129
    %v1142 = vpack.c.b16 %v1132, %v1131
    %v1143 = vpack.c.b16 %v1134, %v1133
    %v1144 = vpack.c.b16 %v1136, %v1135
    %v1145 = vpack.c.b16 %v1138, %v1137
    %v1146 = vpack.c.b16 %v1140, %v1139
    %v1154 = vsel %vm563, %v1113, 0
    %1156 = vmatpush.bf16.msra.mxu0 0
    %1157 = vmatpush.bf16.msra.mxu0 0
    %1158 = vmatpush.bf16.msra.mxu0 %v1146
    %1159 = vmatpush.bf16.msra.mxu0 %v1145
    %1160 = vmatpush.bf16.msra.mxu0 %v1144
    %1161 = vmatpush.bf16.msra.mxu0 %v1143
    %1162 = vmatpush.bf16.msra.mxu0 %v1142
    %1163 = vmatpush.bf16.msra.mxu0 %v1141
    %1164 = vmatmul.bf16.gmra.mxu0 %v1154
    %v1165 = vpop.f32.mrf.mxu0
    %v1166 = vadd.f32 %v1115, %v1165
    %v1167 = vpop.f32.mrf.mxu0
    %v1168 = vadd.f32 %v1115, %v1167
    %1169 = vdwg.mxu0
    %v1170 = vmax.f32 %v1166, 0.0
    %v1171 = vmax.f32 %v1168, 0.0
    %s1172 = scalar_lea.vmem %s10, 32
    %v1173 = vld [vmem:[%s1172] sm:$0xf]
    %v1174 = vld [vmem:[%s1172 + $0x4] sm:$0xf]
    %v1175 = vld [vmem:[%s1172 + $0x8] sm:$0xf]
    %v1176 = vld [vmem:[%s1172 + $0xc] sm:$0xf]
    %v1177 = vld [vmem:[%s1172 + $0x10] sm:$0xf]
    %v1178 = vld [vmem:[%s1172 + $0x14] sm:$0xf]
    %v1179 = vld [vmem:[%s1172 + $0x18] sm:$0xf]
    %v1180 = vld [vmem:[%s1172 + $0x1c] sm:$0xf]
    %v1181 = vpack.c.bf16 %v1171, %v1170
    %v1182 = vperm.slane %v689, 3
    %v1191 = vunpack.c.l.b16 %v1173
    %v1192 = vunpack.c.l.b16 %v1174
    %v1193 = vunpack.c.l.b16 %v1175
    %v1194 = vunpack.c.l.b16 %v1176
    %v1195 = vunpack.c.l.b16 %v1177
    %v1196 = vunpack.c.l.b16 %v1178
    %v1197 = vunpack.c.l.b16 %v1179
    %v1198 = vunpack.c.l.b16 %v1180
    %v1199 = vpack.c.b16 %v1192, %v1191
    %v1200 = vpack.c.b16 %v1194, %v1193
    %v1201 = vpack.c.b16 %v1196, %v1195
    %v1202 = vpack.c.b16 %v1198, %v1197
    %v1208 = vsel %vm520, %v1181, 0
    %1210 = vmatpush.bf16.msra.mxu0 0
    %1211 = vmatpush.bf16.msra.mxu0 0
    %1212 = vmatpush.bf16.msra.mxu0 0
    %1213 = vmatpush.bf16.msra.mxu0 0
    %1214 = vmatpush.bf16.msra.mxu0 %v1202
    %1215 = vmatpush.bf16.msra.mxu0 %v1201
    %1216 = vmatpush.bf16.msra.mxu0 %v1200
    %1217 = vmatpush.bf16.msra.mxu0 %v1199
    %1218 = vmatmul.bf16.gmra.mxu0 %v1208
    %v1219 = vpop.f32.mrf.mxu0
    %v1220 = vadd.f32 %v1182, %v1219
    %v1221 = vpop.f32.mrf.mxu0
    %v1222 = vadd.f32 %v1182, %v1221
    %1223 = vdwg.mxu0
    %v1224 = vadd.f32 %v1064, %v1220
    %v1225 = vadd.f32 %v1065, %v1222
    %v1226 = vsel %vm70, %v1224, 0.0
    %1227 = vadd.xlane.f32.xlu0 %v1226
    %v1228 = vpop.xlane.xlu0 %1227
    %v1229 = vsel %vm70, %v1225, 0.0
    %1230 = vadd.xlane.f32.xlu0 %v1229
    %v1231 = vpop.xlane.xlu0 %1230
    %v1232 = vmul.f32 %v1228, %v392
    %v1233 = vmul.f32 %v1231, %v392
    %v1234 = vsub.f32 %v1224, %v1232
    %v1235 = vsub.f32 %v1225, %v1233
    %v1236 = vmul.f32 %v1234, %v1234
    %v1237 = vmul.f32 %v1235, %v1235
    %v1238 = vsel %vm70, %v1236, 0.0
    %1239 = vadd.xlane.f32.xlu0 %v1238
    %v1240 = vpop.xlane.xlu0 %1239
    %v1241 = vsel %vm70, %v1237, 0.0
    %1242 = vadd.xlane.f32.xlu0 %v1241
    %v1243 = vpop.xlane.xlu0 %1242
    %v1244 = vmul.f32 %v1240, %v392
    %v1245 = vmul.f32 %v1243, %v392
    %v1246 = vadd.f32 %v1244, 1e-05
    %v1247 = vadd.f32 %v1245, 1e-05
    %v1248 = vrsqrt.pop %v1246
    %v1249 = vmul.f32 %v1248, %v1246
    %v1250 = vmul.f32 %v1249, %v1248
    %v1251 = vmul.f32 0.5, %v1250
    %v1252 = vsub.f32 1.5, %v1251
    %v1253 = vmul.f32 %v1248, %v1252
    %vm1254 = vweird.f32 %v1246
    %vm1255 = vweird.f32 %v1248
    %vm1256 = vmor %vm1254, %vm1255
    %v1257 = vsel %vm1256, %v1248, %v1253
    %v1258 = vrsqrt.pop %v1247
    %v1259 = vmul.f32 %v1258, %v1247
    %v1260 = vmul.f32 %v1259, %v1258
    %v1261 = vmul.f32 0.5, %v1260
    %v1262 = vsub.f32 1.5, %v1261
    %v1263 = vmul.f32 %v1258, %v1262
    %vm1264 = vweird.f32 %v1247
    %vm1265 = vweird.f32 %v1258
    %vm1266 = vmor %vm1264, %vm1265
    %v1267 = vsel %vm1266, %v1258, %v1263
    %v1268 = vmul.f32 %v1234, %v1257
    %v1269 = vmul.f32 %v1235, %v1267
    %v1270 = vperm.slane %v689, 4
    %v1271 = vmul.f32 %v1268, %v1270
    %v1272 = vmul.f32 %v1269, %v1270
    %v1273 = vperm.slane %v689, 5
    %v1274 = vadd.f32 %v1271, %v1273
    %v1275 = vadd.f32 %v1272, %v1273
    %v1276 = vmul.f32 %v1274, %v440
    %v1277 = vmul.f32 %v1275, %v445
    %1278 = vst.msk [vmem:[#allocation2] sm:$0xff] %vm70, %v1276
    %1279 = vst.msk [vmem:[#allocation2 + $0x8] sm:$0xff] %vm70, %v1277
    // Predicated region
    $region46: #{tpu_custom_call.1} parent=1 // pred_check
      _
    $region47: #{tpu_custom_call.1} parent=1 // pred_check_branch
      %1281 = sbr.rel (0) target = $region49
    $region48: #{tpu_custom_call.1} parent=1 // pred_region
      %1283 = vsyncadd [#allocation3], 0
      %s1284 = sshll.u32 [#allocation2], 4
      %s1285 = int_to_ptr.vmem [resolvable:$true] %s1284
      %s1286 = sshll.u32 %s11, 4
      %s1287 = int_to_ptr.hbm [resolvable:$true] %s1286
      %1292 = dma.vmem_to_hbm [thread:$0]  %s1285, 256, %s1287, [#allocation3], 128, 128, 8
    $region49: #{tpu_custom_call.1} parent=1 // pred_fallthru
      _
    // Predicated region
    $region50: #{tpu_custom_call.1} parent=1 // pred_check
      _
    $region51: #{tpu_custom_call.1} parent=1 // pred_check_branch
      %1294 = sbr.rel (0) target = $region53
    $region52: #{tpu_custom_call.1} parent=1 // pred_region
      %1296 = dma.done [#allocation3], 256
    $region53: #{tpu_custom_call.1} parent=1 // pred_fallthru
      _
    %1297 = vsyncpa [#allocation3], 1

</llo_original>
